<compile_context>
chip_gen: v5e
topology: v5e:2x2
jax: 0.10.0
libtpu: 0.0.40
codegen_flags: <defaults>
</compile_context>

<pallas_src>
import functools

import jax
import jax.numpy as jnp
from jax.experimental import pallas as pl
from jax.experimental.pallas import tpu as pltpu

EPS = 1e-5


# ------------------------- in-kernel building blocks -------------------------

def _pad_time(x, pad):
    """Zero-pad `pad` rows on both ends of the time (sublane) axis."""
    z = jnp.zeros((pad, x.shape[1]), x.dtype)
    return jnp.concatenate([z, x, z], axis=0)


def _im2col(x, K):
    """x: [T, C] -> [T, K*C]; column block k holds x[t + k - K//2] (zero pad)."""
    T = x.shape[0]
    xp = _pad_time(x, K // 2)
    return jnp.concatenate([xp[k:k + T, :] for k in range(K)], axis=1)


def _shifts(x, K):
    """List of K zero-padded time shifts of x ([T, C]); element k is x[t + k - K//2]."""
    T = x.shape[0]
    xp = _pad_time(x, K // 2)
    return [xp[k:k + T, :] for k in range(K)]


def _conv1d_same(x, w_flat, b, K):
    """x: [T, Cin], w_flat: [K*Cin, Cout] (tap-major), b: [1, Cout] -> [T, Cout]."""
    return jnp.dot(_im2col(x, K), w_flat, preferred_element_type=jnp.float32) + b


def _layernorm(x, gamma, beta):
    """LayerNorm over the channel (lane) dim, matching modules.LayerNorm."""
    mu = jnp.mean(x, axis=-1, keepdims=True)
    var = jnp.mean(jnp.square(x - mu), axis=-1, keepdims=True)
    return (x - mu) * jax.lax.rsqrt(var + EPS) * gamma + beta


# --------------------------------- kernel ------------------------------------

def ddv2_kernel(x_ref, side_ref,
                w1_ref, b1_ref, g1_ref, be1_ref,
                w2_ref, b2_ref, g2_ref, be2_ref,
                wp1h_ref, bp1_ref, gp1_ref, bep1_ref,
                vk_ref, uk_ref,
                wp2_ref, bp2_ref, gp2_ref, bep2_ref,
                wo_ref, bo_ref,
                out_ref, *, K):
    x = x_ref[0]                    # [T, Cin]
    side = side_ref[0]              # [T, 3] = [mask | dur_r | dur_hat]
    T = x.shape[0]
    mask = side[:, 0:1]             # [T, 1]

    # trunk: conv_1 -> relu -> norm_1 -> conv_2 -> relu -> norm_2
    h = _conv1d_same(x * mask, w1_ref[...], b1_ref[...], K)
    h = _layernorm(jnp.maximum(h, 0.0), g1_ref[...], be1_ref[...])
    h = _conv1d_same(h * mask, w2_ref[...], b2_ref[...], K)
    h = _layernorm(jnp.maximum(h, 0.0), g2_ref[...], be2_ref[...])

    # pre_out_conv_1, branch-invariant part (the h-half of the 2F weights).
    base = _conv1d_same(h * mask, wp1h_ref[...], bp1_ref[...], K)    # [T, F]

    # dur_proj is rank-1; its path through the dur-half of pre_out_conv_1
    # collapses to K broadcast FMAs using precomputed
    #   uk[k] = bd @ wp1[k, F:, :]   (mask-shift term, branch invariant)
    #   vk[k] = wd @ wp1[k, F:, :]   (scaled by shifted masked durations)
    sd = jnp.concatenate([mask, side[:, 1:3] * mask], axis=1)        # [T, 3]
    sh = _shifts(sd, K)                                              # K x [T, 3]
    for k in range(K):
        base = base + sh[k][:, 0:1] * uk_ref[k:k + 1, :]
    dr = jnp.zeros_like(base)
    dh = jnp.zeros_like(base)
    for k in range(K):
        dr = dr + sh[k][:, 1:2] * vk_ref[k:k + 1, :]
        dh = dh + sh[k][:, 2:3] * vk_ref[k:k + 1, :]

    # Both duration branches stacked along rows -> one pass on [2T, F].
    z = jnp.concatenate([base + dr, base + dh], axis=0)              # [2T, F]
    mask2 = jnp.concatenate([mask, mask], axis=0)                    # [2T, 1]
    z = _layernorm(jnp.maximum(z, 0.0), gp1_ref[...], bep1_ref[...])
    z = z * mask2

    # pre_out_conv_2 on both branches with a single matmul; im2col is done
    # per branch so conv taps never cross the branch boundary.
    cols = jnp.concatenate([_im2col(z[:T], K), _im2col(z[T:], K)], axis=0)
    z = jnp.dot(cols, wp2_ref[...], preferred_element_type=jnp.float32) + bp2_ref[...]
    z = _layernorm(jnp.maximum(z, 0.0), gp2_ref[...], bep2_ref[...])
    z = z * mask2                                                    # [2T, F]

    # Linear(F, 1) + Sigmoid, computed as wo @ z^T so T lands on lanes and the
    # output store is one contiguous row (lane-dense) instead of a [T,1] column.
    logits = jnp.dot(wo_ref[...], z.T, preferred_element_type=jnp.float32)
    out_ref[0] = jax.nn.sigmoid(logits + bo_ref[...])                # [1, 2T]


# -------------------------------- wrapper -------------------------------------

_WEIGHT_ORDER = ["w1", "b1", "g1", "be1", "w2", "b2", "g2", "be2",
                 "wp1h", "bp1", "gp1", "bep1", "vk", "uk",
                 "wp2", "bp2", "gp2", "bep2", "wo", "bo"]


def duration_discriminator_v2(x_ncw, x_mask_ncw, dur_r_ncw, dur_hat_ncw,
                              kparams, K):
    """Inputs in PyTorch NCW layout; returns [[prob_r], [prob_hat]], each [B, T, 1]."""
    assert K % 2 == 1, "im2col 'same' padding assumes odd kernel_size (as PyTorch pad=K//2)"
    x_ntc = jnp.transpose(x_ncw, (0, 2, 1)).astype(jnp.float32)       # [B, T, Cin]
    mask = jnp.transpose(x_mask_ncw, (0, 2, 1)).astype(jnp.float32)   # [B, T, 1]
    durr = jnp.transpose(dur_r_ncw, (0, 2, 1)).astype(jnp.float32)
    durh = jnp.transpose(dur_hat_ncw, (0, 2, 1)).astype(jnp.float32)
    side = jnp.concatenate([mask, durr, durh], axis=-1)               # [B, T, 3]

    B, T, _ = x_ntc.shape

    def bspec(shape):
        zeros = (0,) * (len(shape) - 1)
        return pl.BlockSpec((1,) + tuple(shape[1:]),
                            lambda b, zeros=zeros: (b,) + zeros)

    def wspec(arr):  # grid-invariant weights: full-array block, constant index
        zeros = (0,) * arr.ndim
        return pl.BlockSpec(arr.shape, lambda b, zeros=zeros: zeros)

    weights = [kparams[k] for k in _WEIGHT_ORDER]

    in_specs = ([bspec(x_ntc.shape), bspec(side.shape)]
                + [wspec(w) for w in weights])
    out_spec = pl.BlockSpec((1, 1, 2 * T), lambda b: (b, 0, 0))
    out_shape = jax.ShapeDtypeStruct((B, 1, 2 * T), jnp.float32)

    fn = pl.pallas_call(
        functools.partial(ddv2_kernel, K=K),
        grid=(B,),
        in_specs=in_specs,
        out_specs=out_spec,
        out_shape=out_shape,
        compiler_params=pltpu.CompilerParams(
            dimension_semantics=("parallel",)),
    )
    packed = fn(x_ntc, side, *weights)                 # [B, 1, 2T]
    probs = packed.reshape(B, 2, T)
    prob_r = probs[:, 0, :, None]                      # [B, T, 1]
    prob_hat = probs[:, 1, :, None]
    return [[prob_r], [prob_hat]]


# -------------------- deterministic params (PyTorch shapes) -------------------

def make_params(key, in_channels, filter_channels, kernel_size):
    C, F, K = in_channels, filter_channels, kernel_size
    keys = jax.random.split(key, 12)
    s = 0.1
    tp = {
        "conv1_w": jax.random.normal(keys[0], (F, C, K), jnp.float32) * s,
        "conv1_b": jax.random.normal(keys[1], (F,), jnp.float32) * s,
        "norm1_g": jnp.ones((F,), jnp.float32),
        "norm1_b": jnp.zeros((F,), jnp.float32),
        "conv2_w": jax.random.normal(keys[2], (F, F, K), jnp.float32) * s,
        "conv2_b": jax.random.normal(keys[3], (F,), jnp.float32) * s,
        "norm2_g": jnp.ones((F,), jnp.float32),
        "norm2_b": jnp.zeros((F,), jnp.float32),
        "durproj_w": jax.random.normal(keys[4], (F, 1, 1), jnp.float32) * s,
        "durproj_b": jax.random.normal(keys[5], (F,), jnp.float32) * s,
        "pc1_w": jax.random.normal(keys[6], (F, 2 * F, K), jnp.float32) * s,
        "pc1_b": jax.random.normal(keys[7], (F,), jnp.float32) * s,
        "pn1_g": jnp.ones((F,), jnp.float32),
        "pn1_b": jnp.zeros((F,), jnp.float32),
        "pc2_w": jax.random.normal(keys[8], (F, F, K), jnp.float32) * s,
        "pc2_b": jax.random.normal(keys[9], (F,), jnp.float32) * s,
        "pn2_g": jnp.ones((F,), jnp.float32),
        "pn2_b": jnp.zeros((F,), jnp.float32),
        "lin_w": jax.random.normal(keys[10], (1, F), jnp.float32) * s,
        "lin_b": jax.random.normal(keys[11], (1,), jnp.float32) * s,
    }

    def conv_flat(w_oik):  # torch [Cout, Cin, K] -> im2col layout [K*Cin, Cout]
        return jnp.transpose(w_oik, (2, 1, 0)).reshape(-1, w_oik.shape[0])

    wp1 = jnp.transpose(tp["pc1_w"], (2, 1, 0))     # [K, 2F, F]
    wp1_h = wp1[:, :F, :]                           # taps that hit the trunk h
    wp1_d = wp1[:, F:, :]                           # taps that hit dur_proj(dur)
    wd = tp["durproj_w"].reshape(F)                 # dur_proj weight (1 -> F)
    bd = tp["durproj_b"]                            # [F]

    kp = {
        "w1": conv_flat(tp["conv1_w"]), "b1": tp["conv1_b"][None, :],
        "g1": tp["norm1_g"][None, :], "be1": tp["norm1_b"][None, :],
        "w2": conv_flat(tp["conv2_w"]), "b2": tp["conv2_b"][None, :],
        "g2": tp["norm2_g"][None, :], "be2": tp["norm2_b"][None, :],
        "wp1h": wp1_h.reshape(K * F, F), "bp1": tp["pc1_b"][None, :],
        "gp1": tp["pn1_g"][None, :], "bep1": tp["pn1_b"][None, :],
        # rank-1 dur_proj folded through the dur-half of pre_out_conv_1
        "vk": jnp.einsum("c,kco->ko", wd, wp1_d),   # [K, F]
        "uk": jnp.einsum("c,kco->ko", bd, wp1_d),   # [K, F]
        "wp2": conv_flat(tp["pc2_w"]), "bp2": tp["pc2_b"][None, :],
        "gp2": tp["pn2_g"][None, :], "bep2": tp["pn2_b"][None, :],
        "wo": tp["lin_w"],                          # [1, F]
        "bo": tp["lin_b"].reshape(1, 1),
    }
    return tp, kp


# ------------------------------ pure-JAX reference -----------------------------

def _conv1d_ref(x_ncw, w_oik, b, pad):
    y = jax.lax.conv_general_dilated(
        x_ncw, w_oik, window_strides=(1,), padding=[(pad, pad)],
        dimension_numbers=("NCH", "OIH", "NCH"))
    return y + b[None, :, None]


def _layernorm_ref(x_ncw, gamma, beta):
    xt = jnp.transpose(x_ncw, (0, 2, 1))
    mu = jnp.mean(xt, -1, keepdims=True)
    var = jnp.mean(jnp.square(xt - mu), -1, keepdims=True)
    xt = (xt - mu) / jnp.sqrt(var + EPS) * gamma + beta
    return jnp.transpose(xt, (0, 2, 1))


def ref_forward(x, mask, dur_r, dur_hat, tp, K):
    pad = K // 2
    h = _conv1d_ref(x * mask, tp["conv1_w"], tp["conv1_b"], pad)
    h = jax.nn.relu(h)
    h = _layernorm_ref(h, tp["norm1_g"], tp["norm1_b"])
    h = _conv1d_ref(h * mask, tp["conv2_w"], tp["conv2_b"], pad)
    h = jax.nn.relu(h)
    h = _layernorm_ref(h, tp["norm2_g"], tp["norm2_b"])
    outs = []
    for dur in (dur_r, dur_hat):
        d = _conv1d_ref(dur, tp["durproj_w"], tp["durproj_b"], 0)
        z = jnp.concatenate([h, d], axis=1)
        z = _conv1d_ref(z * mask, tp["pc1_w"], tp["pc1_b"], pad)
        z = jax.nn.relu(z)
        z = _layernorm_ref(z, tp["pn1_g"], tp["pn1_b"])
        z = _conv1d_ref(z * mask, tp["pc2_w"], tp["pc2_b"], pad)
        z = jax.nn.relu(z)
        z = _layernorm_ref(z, tp["pn2_g"], tp["pn2_b"])
        z = z * mask
        zt = jnp.transpose(z, (0, 2, 1))                 # [B, T, F]
        outs.append(jax.nn.sigmoid(zt @ tp["lin_w"].T + tp["lin_b"]))
    return outs


# ---------------------------------- main ---------------------------------------

if __name__ == "__main__":
    B, Cin, F, T, K = 2, 16, 32, 16, 3
    # NOTE: p_dropout is unused in the PyTorch forward (no dropout applied),
    # and torch.detach is a no-op for inference semantics.
    key = jax.random.PRNGKey(0)
    kx, kr, kh, kp = jax.random.split(key, 4)

    x = jax.random.normal(kx, (B, Cin, T), jnp.float32)          # NCW
    dur_r = jax.random.normal(kr, (B, 1, T), jnp.float32)
    dur_hat = jax.random.normal(kh, (B, 1, T), jnp.float32)
    # mask: second sequence has only 12 valid frames
    lengths = jnp.array([T, 12])
    x_mask = (jnp.arange(T)[None, :] < lengths[:, None]).astype(jnp.float32)
    x_mask = x_mask[:, None, :]                                  # [B, 1, T]

    torch_params, kernel_params = make_params(kp, Cin, F, K)

    outs = duration_discriminator_v2(x, x_mask, dur_r, dur_hat,
                                     kernel_params, K)
    jax.block_until_ready(outs)

    refs = ref_forward(x, x_mask, dur_r, dur_hat, torch_params, K)
    ok = True
    for (got_list, want) in zip(outs, refs):
        got = got_list[0]
        ok &= bool(jnp.allclose(got, want, atol=1e-4, rtol=1e-3))
    assert ok, "Pallas kernel output does not match JAX reference"
    print("KERNEL_OK")
</pallas_src>

<mosaic_0001>
module attributes {stable_mosaic.version = 11 : i64} {
  func.func @ddv2_kernel(%arg0: i32, %arg1: memref<1x16x16xf32, #tpu.memory_space<vmem>>, %arg2: memref<1x16x3xf32, #tpu.memory_space<vmem>>, %arg3: memref<48x32xf32, #tpu.memory_space<vmem>>, %arg4: memref<1x32xf32, #tpu.memory_space<vmem>>, %arg5: memref<1x32xf32, #tpu.memory_space<vmem>>, %arg6: memref<1x32xf32, #tpu.memory_space<vmem>>, %arg7: memref<96x32xf32, #tpu.memory_space<vmem>>, %arg8: memref<1x32xf32, #tpu.memory_space<vmem>>, %arg9: memref<1x32xf32, #tpu.memory_space<vmem>>, %arg10: memref<1x32xf32, #tpu.memory_space<vmem>>, %arg11: memref<96x32xf32, #tpu.memory_space<vmem>>, %arg12: memref<1x32xf32, #tpu.memory_space<vmem>>, %arg13: memref<1x32xf32, #tpu.memory_space<vmem>>, %arg14: memref<1x32xf32, #tpu.memory_space<vmem>>, %arg15: memref<3x32xf32, #tpu.memory_space<vmem>>, %arg16: memref<3x32xf32, #tpu.memory_space<vmem>>, %arg17: memref<96x32xf32, #tpu.memory_space<vmem>>, %arg18: memref<1x32xf32, #tpu.memory_space<vmem>>, %arg19: memref<1x32xf32, #tpu.memory_space<vmem>>, %arg20: memref<1x32xf32, #tpu.memory_space<vmem>>, %arg21: memref<1x32xf32, #tpu.memory_space<vmem>>, %arg22: memref<1x1xf32, #tpu.memory_space<vmem>>, %arg23: memref<1x1x32xf32, #tpu.memory_space<vmem>>) attributes {dimension_semantics = [#tpu.dimension_semantics<parallel>], iteration_bounds = array<i64: 2>, scalar_prefetch = 0 : i64, scratch_operands = 0 : i64, tpu.core_type = #tpu.core_type<tc>, window_params = [{transform_indices = @transform_0, window_bounds = array<i64: 1, 16, 16>}, {transform_indices = @transform_1, window_bounds = array<i64: 1, 16, 3>}, {pipeline_mode = #tpu.pipeline_mode<synchronous>, transform_indices = @transform_2, window_bounds = array<i64: 48, 32>}, {pipeline_mode = #tpu.pipeline_mode<synchronous>, transform_indices = @transform_3, window_bounds = array<i64: 1, 32>}, {pipeline_mode = #tpu.pipeline_mode<synchronous>, transform_indices = @transform_4, window_bounds = array<i64: 1, 32>}, {pipeline_mode = #tpu.pipeline_mode<synchronous>, transform_indices = @transform_5, window_bounds = array<i64: 1, 32>}, {pipeline_mode = #tpu.pipeline_mode<synchronous>, transform_indices = @transform_6, window_bounds = array<i64: 96, 32>}, {pipeline_mode = #tpu.pipeline_mode<synchronous>, transform_indices = @transform_7, window_bounds = array<i64: 1, 32>}, {pipeline_mode = #tpu.pipeline_mode<synchronous>, transform_indices = @transform_8, window_bounds = array<i64: 1, 32>}, {pipeline_mode = #tpu.pipeline_mode<synchronous>, transform_indices = @transform_9, window_bounds = array<i64: 1, 32>}, {pipeline_mode = #tpu.pipeline_mode<synchronous>, transform_indices = @transform_10, window_bounds = array<i64: 96, 32>}, {pipeline_mode = #tpu.pipeline_mode<synchronous>, transform_indices = @transform_11, window_bounds = array<i64: 1, 32>}, {pipeline_mode = #tpu.pipeline_mode<synchronous>, transform_indices = @transform_12, window_bounds = array<i64: 1, 32>}, {pipeline_mode = #tpu.pipeline_mode<synchronous>, transform_indices = @transform_13, window_bounds = array<i64: 1, 32>}, {pipeline_mode = #tpu.pipeline_mode<synchronous>, transform_indices = @transform_14, window_bounds = array<i64: 3, 32>}, {pipeline_mode = #tpu.pipeline_mode<synchronous>, transform_indices = @transform_15, window_bounds = array<i64: 3, 32>}, {pipeline_mode = #tpu.pipeline_mode<synchronous>, transform_indices = @transform_16, window_bounds = array<i64: 96, 32>}, {pipeline_mode = #tpu.pipeline_mode<synchronous>, transform_indices = @transform_17, window_bounds = array<i64: 1, 32>}, {pipeline_mode = #tpu.pipeline_mode<synchronous>, transform_indices = @transform_18, window_bounds = array<i64: 1, 32>}, {pipeline_mode = #tpu.pipeline_mode<synchronous>, transform_indices = @transform_19, window_bounds = array<i64: 1, 32>}, {pipeline_mode = #tpu.pipeline_mode<synchronous>, transform_indices = @transform_20, window_bounds = array<i64: 1, 32>}, {pipeline_mode = #tpu.pipeline_mode<synchronous>, transform_indices = @transform_21, window_bounds = array<i64: 1, 1>}, {transform_indices = @transform_22, window_bounds = array<i64: 1, 1, 32>}]} {
    %c0 = arith.constant 0 : index
    %c0_0 = arith.constant 0 : index
    %c0_1 = arith.constant 0 : index
    %0 = vector.load %arg1[%c0, %c0_0, %c0_1] : memref<1x16x16xf32, #tpu.memory_space<vmem>>, vector<1x16x16xf32>
    %1 = vector.shape_cast %0 : vector<1x16x16xf32> to vector<16x16xf32>
    %c0_2 = arith.constant 0 : index
    %c0_3 = arith.constant 0 : index
    %c0_4 = arith.constant 0 : index
    %2 = vector.load %arg2[%c0_2, %c0_3, %c0_4] : memref<1x16x3xf32, #tpu.memory_space<vmem>>, vector<1x16x3xf32>
    %3 = vector.shape_cast %2 : vector<1x16x3xf32> to vector<16x3xf32>
    %4 = vector.extract_strided_slice %3 {offsets = [0, 0], sizes = [16, 1], strides = [1, 1]} : vector<16x3xf32> to vector<16x1xf32>
    %5 = vector.broadcast %4 : vector<16x1xf32> to vector<16x16xf32>
    %6 = arith.mulf %1, %5 : vector<16x16xf32>
    %c0_5 = arith.constant 0 : index
    %c0_6 = arith.constant 0 : index
    %7 = vector.load %arg3[%c0_5, %c0_6] : memref<48x32xf32, #tpu.memory_space<vmem>>, vector<48x32xf32>
    %c0_7 = arith.constant 0 : index
    %c0_8 = arith.constant 0 : index
    %8 = vector.load %arg4[%c0_7, %c0_8] : memref<1x32xf32, #tpu.memory_space<vmem>>, vector<1x32xf32>
    %cst = arith.constant 0.000000e+00 : f32
    %9 = vector.broadcast %cst : f32 to vector<1x16xf32>
    %10 = tpu.concatenate %9, %6, %9 in 0 : vector<1x16xf32>, vector<16x16xf32>, vector<1x16xf32> -> vector<18x16xf32>
    %11 = vector.extract_strided_slice %10 {offsets = [0, 0], sizes = [16, 16], strides = [1, 1]} : vector<18x16xf32> to vector<16x16xf32>
    %12 = vector.extract_strided_slice %10 {offsets = [1, 0], sizes = [16, 16], strides = [1, 1]} : vector<18x16xf32> to vector<16x16xf32>
    %13 = vector.extract_strided_slice %10 {offsets = [2, 0], sizes = [16, 16], strides = [1, 1]} : vector<18x16xf32> to vector<16x16xf32>
    %14 = tpu.concatenate %11, %12, %13 in 1 : vector<16x16xf32>, vector<16x16xf32>, vector<16x16xf32> -> vector<16x48xf32>
    %cst_9 = arith.constant dense<0.000000e+00> : vector<16x32xf32>
    %15 = tpu.matmul %14, %7, %cst_9 {dimension_numbers = #tpu.dot_dimension_numbers<[1], [0], [0], [1], [0, 0, 1, 1], [], []>} : vector<16x48xf32>, vector<48x32xf32>, vector<16x32xf32> -> vector<16x32xf32>
    %16 = vector.broadcast %8 : vector<1x32xf32> to vector<16x32xf32>
    %17 = arith.addf %15, %16 : vector<16x32xf32>
    %cst_10 = arith.constant 0.000000e+00 : f32
    %18 = vector.broadcast %cst_10 : f32 to vector<16x32xf32>
    %19 = arith.maximumf %17, %18 : vector<16x32xf32>
    %c0_11 = arith.constant 0 : index
    %c0_12 = arith.constant 0 : index
    %20 = vector.load %arg5[%c0_11, %c0_12] : memref<1x32xf32, #tpu.memory_space<vmem>>, vector<1x32xf32>
    %c0_13 = arith.constant 0 : index
    %c0_14 = arith.constant 0 : index
    %21 = vector.load %arg6[%c0_13, %c0_14] : memref<1x32xf32, #tpu.memory_space<vmem>>, vector<1x32xf32>
    %cst_15 = arith.constant dense<0.000000e+00> : vector<16xf32>
    %22 = vector.multi_reduction <add>, %19, %cst_15 [1] : vector<16x32xf32> to vector<16xf32>
    %23 = vector.shape_cast %22 : vector<16xf32> to vector<16x1xf32>
    %cst_16 = arith.constant 3.200000e+01 : f32
    %24 = vector.broadcast %cst_16 : f32 to vector<16x1xf32>
    %25 = arith.divf %23, %24 : vector<16x1xf32>
    %26 = vector.broadcast %25 : vector<16x1xf32> to vector<16x32xf32>
    %27 = arith.subf %19, %26 : vector<16x32xf32>
    %28 = arith.mulf %27, %27 : vector<16x32xf32>
    %cst_17 = arith.constant dense<0.000000e+00> : vector<16xf32>
    %29 = vector.multi_reduction <add>, %28, %cst_17 [1] : vector<16x32xf32> to vector<16xf32>
    %30 = vector.shape_cast %29 : vector<16xf32> to vector<16x1xf32>
    %cst_18 = arith.constant 3.200000e+01 : f32
    %31 = vector.broadcast %cst_18 : f32 to vector<16x1xf32>
    %32 = arith.divf %30, %31 : vector<16x1xf32>
    %33 = vector.broadcast %25 : vector<16x1xf32> to vector<16x32xf32>
    %34 = arith.subf %19, %33 : vector<16x32xf32>
    %cst_19 = arith.constant 9.99999974E-6 : f32
    %35 = vector.broadcast %cst_19 : f32 to vector<16x1xf32>
    %36 = arith.addf %32, %35 : vector<16x1xf32>
    %37 = math.rsqrt %36 : vector<16x1xf32>
    %38 = vector.broadcast %37 : vector<16x1xf32> to vector<16x32xf32>
    %39 = arith.mulf %34, %38 : vector<16x32xf32>
    %40 = vector.broadcast %20 : vector<1x32xf32> to vector<16x32xf32>
    %41 = arith.mulf %39, %40 : vector<16x32xf32>
    %42 = vector.broadcast %21 : vector<1x32xf32> to vector<16x32xf32>
    %43 = arith.addf %41, %42 : vector<16x32xf32>
    %44 = vector.broadcast %4 : vector<16x1xf32> to vector<16x32xf32>
    %45 = arith.mulf %43, %44 : vector<16x32xf32>
    %c0_20 = arith.constant 0 : index
    %c0_21 = arith.constant 0 : index
    %46 = vector.load %arg7[%c0_20, %c0_21] : memref<96x32xf32, #tpu.memory_space<vmem>>, vector<96x32xf32>
    %c0_22 = arith.constant 0 : index
    %c0_23 = arith.constant 0 : index
    %47 = vector.load %arg8[%c0_22, %c0_23] : memref<1x32xf32, #tpu.memory_space<vmem>>, vector<1x32xf32>
    %cst_24 = arith.constant 0.000000e+00 : f32
    %48 = vector.broadcast %cst_24 : f32 to vector<1x32xf32>
    %49 = tpu.concatenate %48, %45, %48 in 0 : vector<1x32xf32>, vector<16x32xf32>, vector<1x32xf32> -> vector<18x32xf32>
    %50 = vector.extract_strided_slice %49 {offsets = [0, 0], sizes = [16, 32], strides = [1, 1]} : vector<18x32xf32> to vector<16x32xf32>
    %51 = vector.extract_strided_slice %49 {offsets = [1, 0], sizes = [16, 32], strides = [1, 1]} : vector<18x32xf32> to vector<16x32xf32>
    %52 = vector.extract_strided_slice %49 {offsets = [2, 0], sizes = [16, 32], strides = [1, 1]} : vector<18x32xf32> to vector<16x32xf32>
    %53 = tpu.concatenate %50, %51, %52 in 1 : vector<16x32xf32>, vector<16x32xf32>, vector<16x32xf32> -> vector<16x96xf32>
    %cst_25 = arith.constant dense<0.000000e+00> : vector<16x32xf32>
    %54 = tpu.matmul %53, %46, %cst_25 {dimension_numbers = #tpu.dot_dimension_numbers<[1], [0], [0], [1], [0, 0, 1, 1], [], []>} : vector<16x96xf32>, vector<96x32xf32>, vector<16x32xf32> -> vector<16x32xf32>
    %55 = vector.broadcast %47 : vector<1x32xf32> to vector<16x32xf32>
    %56 = arith.addf %54, %55 : vector<16x32xf32>
    %cst_26 = arith.constant 0.000000e+00 : f32
    %57 = vector.broadcast %cst_26 : f32 to vector<16x32xf32>
    %58 = arith.maximumf %56, %57 : vector<16x32xf32>
    %c0_27 = arith.constant 0 : index
    %c0_28 = arith.constant 0 : index
    %59 = vector.load %arg9[%c0_27, %c0_28] : memref<1x32xf32, #tpu.memory_space<vmem>>, vector<1x32xf32>
    %c0_29 = arith.constant 0 : index
    %c0_30 = arith.constant 0 : index
    %60 = vector.load %arg10[%c0_29, %c0_30] : memref<1x32xf32, #tpu.memory_space<vmem>>, vector<1x32xf32>
    %cst_31 = arith.constant dense<0.000000e+00> : vector<16xf32>
    %61 = vector.multi_reduction <add>, %58, %cst_31 [1] : vector<16x32xf32> to vector<16xf32>
    %62 = vector.shape_cast %61 : vector<16xf32> to vector<16x1xf32>
    %cst_32 = arith.constant 3.200000e+01 : f32
    %63 = vector.broadcast %cst_32 : f32 to vector<16x1xf32>
    %64 = arith.divf %62, %63 : vector<16x1xf32>
    %65 = vector.broadcast %64 : vector<16x1xf32> to vector<16x32xf32>
    %66 = arith.subf %58, %65 : vector<16x32xf32>
    %67 = arith.mulf %66, %66 : vector<16x32xf32>
    %cst_33 = arith.constant dense<0.000000e+00> : vector<16xf32>
    %68 = vector.multi_reduction <add>, %67, %cst_33 [1] : vector<16x32xf32> to vector<16xf32>
    %69 = vector.shape_cast %68 : vector<16xf32> to vector<16x1xf32>
    %cst_34 = arith.constant 3.200000e+01 : f32
    %70 = vector.broadcast %cst_34 : f32 to vector<16x1xf32>
    %71 = arith.divf %69, %70 : vector<16x1xf32>
    %72 = vector.broadcast %64 : vector<16x1xf32> to vector<16x32xf32>
    %73 = arith.subf %58, %72 : vector<16x32xf32>
    %cst_35 = arith.constant 9.99999974E-6 : f32
    %74 = vector.broadcast %cst_35 : f32 to vector<16x1xf32>
    %75 = arith.addf %71, %74 : vector<16x1xf32>
    %76 = math.rsqrt %75 : vector<16x1xf32>
    %77 = vector.broadcast %76 : vector<16x1xf32> to vector<16x32xf32>
    %78 = arith.mulf %73, %77 : vector<16x32xf32>
    %79 = vector.broadcast %59 : vector<1x32xf32> to vector<16x32xf32>
    %80 = arith.mulf %78, %79 : vector<16x32xf32>
    %81 = vector.broadcast %60 : vector<1x32xf32> to vector<16x32xf32>
    %82 = arith.addf %80, %81 : vector<16x32xf32>
    %83 = vector.broadcast %4 : vector<16x1xf32> to vector<16x32xf32>
    %84 = arith.mulf %82, %83 : vector<16x32xf32>
    %c0_36 = arith.constant 0 : index
    %c0_37 = arith.constant 0 : index
    %85 = vector.load %arg11[%c0_36, %c0_37] : memref<96x32xf32, #tpu.memory_space<vmem>>, vector<96x32xf32>
    %c0_38 = arith.constant 0 : index
    %c0_39 = arith.constant 0 : index
    %86 = vector.load %arg12[%c0_38, %c0_39] : memref<1x32xf32, #tpu.memory_space<vmem>>, vector<1x32xf32>
    %cst_40 = arith.constant 0.000000e+00 : f32
    %87 = vector.broadcast %cst_40 : f32 to vector<1x32xf32>
    %88 = tpu.concatenate %87, %84, %87 in 0 : vector<1x32xf32>, vector<16x32xf32>, vector<1x32xf32> -> vector<18x32xf32>
    %89 = vector.extract_strided_slice %88 {offsets = [0, 0], sizes = [16, 32], strides = [1, 1]} : vector<18x32xf32> to vector<16x32xf32>
    %90 = vector.extract_strided_slice %88 {offsets = [1, 0], sizes = [16, 32], strides = [1, 1]} : vector<18x32xf32> to vector<16x32xf32>
    %91 = vector.extract_strided_slice %88 {offsets = [2, 0], sizes = [16, 32], strides = [1, 1]} : vector<18x32xf32> to vector<16x32xf32>
    %92 = tpu.concatenate %89, %90, %91 in 1 : vector<16x32xf32>, vector<16x32xf32>, vector<16x32xf32> -> vector<16x96xf32>
    %cst_41 = arith.constant dense<0.000000e+00> : vector<16x32xf32>
    %93 = tpu.matmul %92, %85, %cst_41 {dimension_numbers = #tpu.dot_dimension_numbers<[1], [0], [0], [1], [0, 0, 1, 1], [], []>} : vector<16x96xf32>, vector<96x32xf32>, vector<16x32xf32> -> vector<16x32xf32>
    %94 = vector.broadcast %86 : vector<1x32xf32> to vector<16x32xf32>
    %95 = arith.addf %93, %94 : vector<16x32xf32>
    %96 = vector.extract_strided_slice %3 {offsets = [0, 1], sizes = [16, 2], strides = [1, 1]} : vector<16x3xf32> to vector<16x2xf32>
    %97 = vector.broadcast %4 : vector<16x1xf32> to vector<16x2xf32>
    %98 = arith.mulf %96, %97 : vector<16x2xf32>
    %99 = tpu.concatenate %4, %98 in 1 : vector<16x1xf32>, vector<16x2xf32> -> vector<16x3xf32>
    %cst_42 = arith.constant 0.000000e+00 : f32
    %100 = vector.broadcast %cst_42 : f32 to vector<1x3xf32>
    %101 = tpu.concatenate %100, %99, %100 in 0 : vector<1x3xf32>, vector<16x3xf32>, vector<1x3xf32> -> vector<18x3xf32>
    %102 = vector.extract_strided_slice %101 {offsets = [0, 0], sizes = [16, 3], strides = [1, 1]} : vector<18x3xf32> to vector<16x3xf32>
    %103 = vector.extract_strided_slice %101 {offsets = [1, 0], sizes = [16, 3], strides = [1, 1]} : vector<18x3xf32> to vector<16x3xf32>
    %104 = vector.extract_strided_slice %101 {offsets = [2, 0], sizes = [16, 3], strides = [1, 1]} : vector<18x3xf32> to vector<16x3xf32>
    %105 = vector.extract_strided_slice %102 {offsets = [0, 0], sizes = [16, 1], strides = [1, 1]} : vector<16x3xf32> to vector<16x1xf32>
    %c0_43 = arith.constant 0 : index
    %c0_44 = arith.constant 0 : index
    %106 = vector.load %arg16[%c0_43, %c0_44] : memref<3x32xf32, #tpu.memory_space<vmem>>, vector<1x32xf32>
    %107 = vector.broadcast %105 : vector<16x1xf32> to vector<16x32xf32>
    %108 = vector.broadcast %106 : vector<1x32xf32> to vector<16x32xf32>
    %109 = arith.mulf %107, %108 : vector<16x32xf32>
    %110 = arith.addf %95, %109 : vector<16x32xf32>
    %111 = vector.extract_strided_slice %103 {offsets = [0, 0], sizes = [16, 1], strides = [1, 1]} : vector<16x3xf32> to vector<16x1xf32>
    %c1 = arith.constant 1 : index
    %c0_45 = arith.constant 0 : index
    %112 = vector.load %arg16[%c1, %c0_45] : memref<3x32xf32, #tpu.memory_space<vmem>>, vector<1x32xf32>
    %113 = vector.broadcast %111 : vector<16x1xf32> to vector<16x32xf32>
    %114 = vector.broadcast %112 : vector<1x32xf32> to vector<16x32xf32>
    %115 = arith.mulf %113, %114 : vector<16x32xf32>
    %116 = arith.addf %110, %115 : vector<16x32xf32>
    %117 = vector.extract_strided_slice %104 {offsets = [0, 0], sizes = [16, 1], strides = [1, 1]} : vector<16x3xf32> to vector<16x1xf32>
    %c2 = arith.constant 2 : index
    %c0_46 = arith.constant 0 : index
    %118 = vector.load %arg16[%c2, %c0_46] : memref<3x32xf32, #tpu.memory_space<vmem>>, vector<1x32xf32>
    %119 = vector.broadcast %117 : vector<16x1xf32> to vector<16x32xf32>
    %120 = vector.broadcast %118 : vector<1x32xf32> to vector<16x32xf32>
    %121 = arith.mulf %119, %120 : vector<16x32xf32>
    %122 = arith.addf %116, %121 : vector<16x32xf32>
    %cst_47 = arith.constant 0.000000e+00 : f32
    %123 = vector.broadcast %cst_47 : f32 to vector<16x32xf32>
    %cst_48 = arith.constant 0.000000e+00 : f32
    %124 = vector.broadcast %cst_48 : f32 to vector<16x32xf32>
    %125 = vector.extract_strided_slice %102 {offsets = [0, 1], sizes = [16, 1], strides = [1, 1]} : vector<16x3xf32> to vector<16x1xf32>
    %c0_49 = arith.constant 0 : index
    %c0_50 = arith.constant 0 : index
    %126 = vector.load %arg15[%c0_49, %c0_50] : memref<3x32xf32, #tpu.memory_space<vmem>>, vector<1x32xf32>
    %127 = vector.broadcast %125 : vector<16x1xf32> to vector<16x32xf32>
    %128 = vector.broadcast %126 : vector<1x32xf32> to vector<16x32xf32>
    %129 = arith.mulf %127, %128 : vector<16x32xf32>
    %130 = arith.addf %123, %129 : vector<16x32xf32>
    %131 = vector.extract_strided_slice %102 {offsets = [0, 2], sizes = [16, 1], strides = [1, 1]} : vector<16x3xf32> to vector<16x1xf32>
    %c0_51 = arith.constant 0 : index
    %c0_52 = arith.constant 0 : index
    %132 = vector.load %arg15[%c0_51, %c0_52] : memref<3x32xf32, #tpu.memory_space<vmem>>, vector<1x32xf32>
    %133 = vector.broadcast %131 : vector<16x1xf32> to vector<16x32xf32>
    %134 = vector.broadcast %132 : vector<1x32xf32> to vector<16x32xf32>
    %135 = arith.mulf %133, %134 : vector<16x32xf32>
    %136 = arith.addf %124, %135 : vector<16x32xf32>
    %137 = vector.extract_strided_slice %103 {offsets = [0, 1], sizes = [16, 1], strides = [1, 1]} : vector<16x3xf32> to vector<16x1xf32>
    %c1_53 = arith.constant 1 : index
    %c0_54 = arith.constant 0 : index
    %138 = vector.load %arg15[%c1_53, %c0_54] : memref<3x32xf32, #tpu.memory_space<vmem>>, vector<1x32xf32>
    %139 = vector.broadcast %137 : vector<16x1xf32> to vector<16x32xf32>
    %140 = vector.broadcast %138 : vector<1x32xf32> to vector<16x32xf32>
    %141 = arith.mulf %139, %140 : vector<16x32xf32>
    %142 = arith.addf %130, %141 : vector<16x32xf32>
    %143 = vector.extract_strided_slice %103 {offsets = [0, 2], sizes = [16, 1], strides = [1, 1]} : vector<16x3xf32> to vector<16x1xf32>
    %c1_55 = arith.constant 1 : index
    %c0_56 = arith.constant 0 : index
    %144 = vector.load %arg15[%c1_55, %c0_56] : memref<3x32xf32, #tpu.memory_space<vmem>>, vector<1x32xf32>
    %145 = vector.broadcast %143 : vector<16x1xf32> to vector<16x32xf32>
    %146 = vector.broadcast %144 : vector<1x32xf32> to vector<16x32xf32>
    %147 = arith.mulf %145, %146 : vector<16x32xf32>
    %148 = arith.addf %136, %147 : vector<16x32xf32>
    %149 = vector.extract_strided_slice %104 {offsets = [0, 1], sizes = [16, 1], strides = [1, 1]} : vector<16x3xf32> to vector<16x1xf32>
    %c2_57 = arith.constant 2 : index
    %c0_58 = arith.constant 0 : index
    %150 = vector.load %arg15[%c2_57, %c0_58] : memref<3x32xf32, #tpu.memory_space<vmem>>, vector<1x32xf32>
    %151 = vector.broadcast %149 : vector<16x1xf32> to vector<16x32xf32>
    %152 = vector.broadcast %150 : vector<1x32xf32> to vector<16x32xf32>
    %153 = arith.mulf %151, %152 : vector<16x32xf32>
    %154 = arith.addf %142, %153 : vector<16x32xf32>
    %155 = vector.extract_strided_slice %104 {offsets = [0, 2], sizes = [16, 1], strides = [1, 1]} : vector<16x3xf32> to vector<16x1xf32>
    %c2_59 = arith.constant 2 : index
    %c0_60 = arith.constant 0 : index
    %156 = vector.load %arg15[%c2_59, %c0_60] : memref<3x32xf32, #tpu.memory_space<vmem>>, vector<1x32xf32>
    %157 = vector.broadcast %155 : vector<16x1xf32> to vector<16x32xf32>
    %158 = vector.broadcast %156 : vector<1x32xf32> to vector<16x32xf32>
    %159 = arith.mulf %157, %158 : vector<16x32xf32>
    %160 = arith.addf %148, %159 : vector<16x32xf32>
    %161 = arith.addf %122, %154 : vector<16x32xf32>
    %162 = arith.addf %122, %160 : vector<16x32xf32>
    %163 = tpu.concatenate %161, %162 in 0 : vector<16x32xf32>, vector<16x32xf32> -> vector<32x32xf32>
    %164 = tpu.concatenate %4, %4 in 0 : vector<16x1xf32>, vector<16x1xf32> -> vector<32x1xf32>
    %cst_61 = arith.constant 0.000000e+00 : f32
    %165 = vector.broadcast %cst_61 : f32 to vector<32x32xf32>
    %166 = arith.maximumf %163, %165 : vector<32x32xf32>
    %c0_62 = arith.constant 0 : index
    %c0_63 = arith.constant 0 : index
    %167 = vector.load %arg13[%c0_62, %c0_63] : memref<1x32xf32, #tpu.memory_space<vmem>>, vector<1x32xf32>
    %c0_64 = arith.constant 0 : index
    %c0_65 = arith.constant 0 : index
    %168 = vector.load %arg14[%c0_64, %c0_65] : memref<1x32xf32, #tpu.memory_space<vmem>>, vector<1x32xf32>
    %cst_66 = arith.constant dense<0.000000e+00> : vector<32xf32>
    %169 = vector.multi_reduction <add>, %166, %cst_66 [1] : vector<32x32xf32> to vector<32xf32>
    %170 = vector.shape_cast %169 : vector<32xf32> to vector<32x1xf32>
    %cst_67 = arith.constant 3.200000e+01 : f32
    %171 = vector.broadcast %cst_67 : f32 to vector<32x1xf32>
    %172 = arith.divf %170, %171 : vector<32x1xf32>
    %173 = vector.broadcast %172 : vector<32x1xf32> to vector<32x32xf32>
    %174 = arith.subf %166, %173 : vector<32x32xf32>
    %175 = arith.mulf %174, %174 : vector<32x32xf32>
    %cst_68 = arith.constant dense<0.000000e+00> : vector<32xf32>
    %176 = vector.multi_reduction <add>, %175, %cst_68 [1] : vector<32x32xf32> to vector<32xf32>
    %177 = vector.shape_cast %176 : vector<32xf32> to vector<32x1xf32>
    %cst_69 = arith.constant 3.200000e+01 : f32
    %178 = vector.broadcast %cst_69 : f32 to vector<32x1xf32>
    %179 = arith.divf %177, %178 : vector<32x1xf32>
    %180 = vector.broadcast %172 : vector<32x1xf32> to vector<32x32xf32>
    %181 = arith.subf %166, %180 : vector<32x32xf32>
    %cst_70 = arith.constant 9.99999974E-6 : f32
    %182 = vector.broadcast %cst_70 : f32 to vector<32x1xf32>
    %183 = arith.addf %179, %182 : vector<32x1xf32>
    %184 = math.rsqrt %183 : vector<32x1xf32>
    %185 = vector.broadcast %184 : vector<32x1xf32> to vector<32x32xf32>
    %186 = arith.mulf %181, %185 : vector<32x32xf32>
    %187 = vector.broadcast %167 : vector<1x32xf32> to vector<32x32xf32>
    %188 = arith.mulf %186, %187 : vector<32x32xf32>
    %189 = vector.broadcast %168 : vector<1x32xf32> to vector<32x32xf32>
    %190 = arith.addf %188, %189 : vector<32x32xf32>
    %191 = vector.broadcast %164 : vector<32x1xf32> to vector<32x32xf32>
    %192 = arith.mulf %190, %191 : vector<32x32xf32>
    %193 = vector.extract_strided_slice %192 {offsets = [0, 0], sizes = [16, 32], strides = [1, 1]} : vector<32x32xf32> to vector<16x32xf32>
    %cst_71 = arith.constant 0.000000e+00 : f32
    %194 = vector.broadcast %cst_71 : f32 to vector<1x32xf32>
    %195 = tpu.concatenate %194, %193, %194 in 0 : vector<1x32xf32>, vector<16x32xf32>, vector<1x32xf32> -> vector<18x32xf32>
    %196 = vector.extract_strided_slice %195 {offsets = [0, 0], sizes = [16, 32], strides = [1, 1]} : vector<18x32xf32> to vector<16x32xf32>
    %197 = vector.extract_strided_slice %195 {offsets = [1, 0], sizes = [16, 32], strides = [1, 1]} : vector<18x32xf32> to vector<16x32xf32>
    %198 = vector.extract_strided_slice %195 {offsets = [2, 0], sizes = [16, 32], strides = [1, 1]} : vector<18x32xf32> to vector<16x32xf32>
    %199 = tpu.concatenate %196, %197, %198 in 1 : vector<16x32xf32>, vector<16x32xf32>, vector<16x32xf32> -> vector<16x96xf32>
    %200 = vector.extract_strided_slice %192 {offsets = [16, 0], sizes = [16, 32], strides = [1, 1]} : vector<32x32xf32> to vector<16x32xf32>
    %cst_72 = arith.constant 0.000000e+00 : f32
    %201 = vector.broadcast %cst_72 : f32 to vector<1x32xf32>
    %202 = tpu.concatenate %201, %200, %201 in 0 : vector<1x32xf32>, vector<16x32xf32>, vector<1x32xf32> -> vector<18x32xf32>
    %203 = vector.extract_strided_slice %202 {offsets = [0, 0], sizes = [16, 32], strides = [1, 1]} : vector<18x32xf32> to vector<16x32xf32>
    %204 = vector.extract_strided_slice %202 {offsets = [1, 0], sizes = [16, 32], strides = [1, 1]} : vector<18x32xf32> to vector<16x32xf32>
    %205 = vector.extract_strided_slice %202 {offsets = [2, 0], sizes = [16, 32], strides = [1, 1]} : vector<18x32xf32> to vector<16x32xf32>
    %206 = tpu.concatenate %203, %204, %205 in 1 : vector<16x32xf32>, vector<16x32xf32>, vector<16x32xf32> -> vector<16x96xf32>
    %207 = tpu.concatenate %199, %206 in 0 : vector<16x96xf32>, vector<16x96xf32> -> vector<32x96xf32>
    %c0_73 = arith.constant 0 : index
    %c0_74 = arith.constant 0 : index
    %208 = vector.load %arg17[%c0_73, %c0_74] : memref<96x32xf32, #tpu.memory_space<vmem>>, vector<96x32xf32>
    %cst_75 = arith.constant dense<0.000000e+00> : vector<32x32xf32>
    %209 = tpu.matmul %207, %208, %cst_75 {dimension_numbers = #tpu.dot_dimension_numbers<[1], [0], [0], [1], [0, 0, 1, 1], [], []>} : vector<32x96xf32>, vector<96x32xf32>, vector<32x32xf32> -> vector<32x32xf32>
    %c0_76 = arith.constant 0 : index
    %c0_77 = arith.constant 0 : index
    %210 = vector.load %arg18[%c0_76, %c0_77] : memref<1x32xf32, #tpu.memory_space<vmem>>, vector<1x32xf32>
    %211 = vector.broadcast %210 : vector<1x32xf32> to vector<32x32xf32>
    %212 = arith.addf %209, %211 : vector<32x32xf32>
    %cst_78 = arith.constant 0.000000e+00 : f32
    %213 = vector.broadcast %cst_78 : f32 to vector<32x32xf32>
    %214 = arith.maximumf %212, %213 : vector<32x32xf32>
    %c0_79 = arith.constant 0 : index
    %c0_80 = arith.constant 0 : index
    %215 = vector.load %arg19[%c0_79, %c0_80] : memref<1x32xf32, #tpu.memory_space<vmem>>, vector<1x32xf32>
    %c0_81 = arith.constant 0 : index
    %c0_82 = arith.constant 0 : index
    %216 = vector.load %arg20[%c0_81, %c0_82] : memref<1x32xf32, #tpu.memory_space<vmem>>, vector<1x32xf32>
    %cst_83 = arith.constant dense<0.000000e+00> : vector<32xf32>
    %217 = vector.multi_reduction <add>, %214, %cst_83 [1] : vector<32x32xf32> to vector<32xf32>
    %218 = vector.shape_cast %217 : vector<32xf32> to vector<32x1xf32>
    %cst_84 = arith.constant 3.200000e+01 : f32
    %219 = vector.broadcast %cst_84 : f32 to vector<32x1xf32>
    %220 = arith.divf %218, %219 : vector<32x1xf32>
    %221 = vector.broadcast %220 : vector<32x1xf32> to vector<32x32xf32>
    %222 = arith.subf %214, %221 : vector<32x32xf32>
    %223 = arith.mulf %222, %222 : vector<32x32xf32>
    %cst_85 = arith.constant dense<0.000000e+00> : vector<32xf32>
    %224 = vector.multi_reduction <add>, %223, %cst_85 [1] : vector<32x32xf32> to vector<32xf32>
    %225 = vector.shape_cast %224 : vector<32xf32> to vector<32x1xf32>
    %cst_86 = arith.constant 3.200000e+01 : f32
    %226 = vector.broadcast %cst_86 : f32 to vector<32x1xf32>
    %227 = arith.divf %225, %226 : vector<32x1xf32>
    %228 = vector.broadcast %220 : vector<32x1xf32> to vector<32x32xf32>
    %229 = arith.subf %214, %228 : vector<32x32xf32>
    %cst_87 = arith.constant 9.99999974E-6 : f32
    %230 = vector.broadcast %cst_87 : f32 to vector<32x1xf32>
    %231 = arith.addf %227, %230 : vector<32x1xf32>
    %232 = math.rsqrt %231 : vector<32x1xf32>
    %233 = vector.broadcast %232 : vector<32x1xf32> to vector<32x32xf32>
    %234 = arith.mulf %229, %233 : vector<32x32xf32>
    %235 = vector.broadcast %215 : vector<1x32xf32> to vector<32x32xf32>
    %236 = arith.mulf %234, %235 : vector<32x32xf32>
    %237 = vector.broadcast %216 : vector<1x32xf32> to vector<32x32xf32>
    %238 = arith.addf %236, %237 : vector<32x32xf32>
    %239 = vector.broadcast %164 : vector<32x1xf32> to vector<32x32xf32>
    %240 = arith.mulf %238, %239 : vector<32x32xf32>
    %c0_88 = arith.constant 0 : index
    %c0_89 = arith.constant 0 : index
    %241 = vector.load %arg21[%c0_88, %c0_89] : memref<1x32xf32, #tpu.memory_space<vmem>>, vector<1x32xf32>
    %242 = tpu.transpose %240, [1, 0] : vector<32x32xf32> -> vector<32x32xf32>
    %cst_90 = arith.constant dense<0.000000e+00> : vector<1x32xf32>
    %243 = tpu.matmul %241, %242, %cst_90 {dimension_numbers = #tpu.dot_dimension_numbers<[1], [0], [0], [1], [0, 0, 1, 1], [], []>} : vector<1x32xf32>, vector<32x32xf32>, vector<1x32xf32> -> vector<1x32xf32>
    %c0_91 = arith.constant 0 : index
    %c0_92 = arith.constant 0 : index
    %244 = vector.load %arg22[%c0_91, %c0_92] : memref<1x1xf32, #tpu.memory_space<vmem>>, vector<1x1xf32>
    %245 = vector.broadcast %244 : vector<1x1xf32> to vector<1x32xf32>
    %246 = arith.addf %243, %245 : vector<1x32xf32>
    %247 = arith.negf %246 : vector<1x32xf32>
    %248 = math.exp %247 : vector<1x32xf32>
    %cst_93 = arith.constant 1.000000e+00 : f32
    %249 = vector.broadcast %cst_93 : f32 to vector<1x32xf32>
    %250 = arith.addf %249, %248 : vector<1x32xf32>
    %251 = arith.divf %249, %250 : vector<1x32xf32>
    %c0_94 = arith.constant 0 : index
    %c0_95 = arith.constant 0 : index
    %c0_96 = arith.constant 0 : index
    %252 = vector.load %arg23[%c0_94, %c0_95, %c0_96] : memref<1x1x32xf32, #tpu.memory_space<vmem>>, vector<1x1x32xf32>
    %253 = vector.shape_cast %252 : vector<1x1x32xf32> to vector<1x32xf32>
    %254 = vector.shape_cast %251 : vector<1x32xf32> to vector<1x1x32xf32>
    tpu.vector_store %arg23[%c0_94, %c0_95, %c0_96], %254 {strides = array<i32>} : memref<1x1x32xf32, #tpu.memory_space<vmem>>, vector<1x1x32xf32>,
    return
  }
  func.func @transform_0(%arg0: i32) -> (i32, i32, i32) {
    %c0_i32 = arith.constant 0 : i32
    %c0_i32_0 = arith.constant 0 : i32
    %c0_i32_1 = arith.constant 0 : i32
    return %arg0, %c0_i32, %c0_i32_0 : i32, i32, i32
  }
  func.func @transform_1(%arg0: i32) -> (i32, i32, i32) {
    %c0_i32 = arith.constant 0 : i32
    %c0_i32_0 = arith.constant 0 : i32
    %c0_i32_1 = arith.constant 0 : i32
    return %arg0, %c0_i32, %c0_i32_0 : i32, i32, i32
  }
  func.func @transform_2(%arg0: i32) -> (i32, i32) {
    %c0_i32 = arith.constant 0 : i32
    %c0_i32_0 = arith.constant 0 : i32
    %c0_i32_1 = arith.constant 0 : i32
    return %c0_i32, %c0_i32_0 : i32, i32
  }
  func.func @transform_3(%arg0: i32) -> (i32, i32) {
    %c0_i32 = arith.constant 0 : i32
    %c0_i32_0 = arith.constant 0 : i32
    %c0_i32_1 = arith.constant 0 : i32
    return %c0_i32, %c0_i32_0 : i32, i32
  }
  func.func @transform_4(%arg0: i32) -> (i32, i32) {
    %c0_i32 = arith.constant 0 : i32
    %c0_i32_0 = arith.constant 0 : i32
    %c0_i32_1 = arith.constant 0 : i32
    return %c0_i32, %c0_i32_0 : i32, i32
  }
  func.func @transform_5(%arg0: i32) -> (i32, i32) {
    %c0_i32 = arith.constant 0 : i32
    %c0_i32_0 = arith.constant 0 : i32
    %c0_i32_1 = arith.constant 0 : i32
    return %c0_i32, %c0_i32_0 : i32, i32
  }
  func.func @transform_6(%arg0: i32) -> (i32, i32) {
    %c0_i32 = arith.constant 0 : i32
    %c0_i32_0 = arith.constant 0 : i32
    %c0_i32_1 = arith.constant 0 : i32
    return %c0_i32, %c0_i32_0 : i32, i32
  }
  func.func @transform_7(%arg0: i32) -> (i32, i32) {
    %c0_i32 = arith.constant 0 : i32
    %c0_i32_0 = arith.constant 0 : i32
    %c0_i32_1 = arith.constant 0 : i32
    return %c0_i32, %c0_i32_0 : i32, i32
  }
  func.func @transform_8(%arg0: i32) -> (i32, i32) {
    %c0_i32 = arith.constant 0 : i32
    %c0_i32_0 = arith.constant 0 : i32
    %c0_i32_1 = arith.constant 0 : i32
    return %c0_i32, %c0_i32_0 : i32, i32
  }
  func.func @transform_9(%arg0: i32) -> (i32, i32) {
    %c0_i32 = arith.constant 0 : i32
    %c0_i32_0 = arith.constant 0 : i32
    %c0_i32_1 = arith.constant 0 : i32
    return %c0_i32, %c0_i32_0 : i32, i32
  }
  func.func @transform_10(%arg0: i32) -> (i32, i32) {
    %c0_i32 = arith.constant 0 : i32
    %c0_i32_0 = arith.constant 0 : i32
    %c0_i32_1 = arith.constant 0 : i32
    return %c0_i32, %c0_i32_0 : i32, i32
  }
  func.func @transform_11(%arg0: i32) -> (i32, i32) {
    %c0_i32 = arith.constant 0 : i32
    %c0_i32_0 = arith.constant 0 : i32
    %c0_i32_1 = arith.constant 0 : i32
    return %c0_i32, %c0_i32_0 : i32, i32
  }
  func.func @transform_12(%arg0: i32) -> (i32, i32) {
    %c0_i32 = arith.constant 0 : i32
    %c0_i32_0 = arith.constant 0 : i32
    %c0_i32_1 = arith.constant 0 : i32
    return %c0_i32, %c0_i32_0 : i32, i32
  }
  func.func @transform_13(%arg0: i32) -> (i32, i32) {
    %c0_i32 = arith.constant 0 : i32
    %c0_i32_0 = arith.constant 0 : i32
    %c0_i32_1 = arith.constant 0 : i32
    return %c0_i32, %c0_i32_0 : i32, i32
  }
  func.func @transform_14(%arg0: i32) -> (i32, i32) {
    %c0_i32 = arith.constant 0 : i32
    %c0_i32_0 = arith.constant 0 : i32
    %c0_i32_1 = arith.constant 0 : i32
    return %c0_i32, %c0_i32_0 : i32, i32
  }
  func.func @transform_15(%arg0: i32) -> (i32, i32) {
    %c0_i32 = arith.constant 0 : i32
    %c0_i32_0 = arith.constant 0 : i32
    %c0_i32_1 = arith.constant 0 : i32
    return %c0_i32, %c0_i32_0 : i32, i32
  }
  func.func @transform_16(%arg0: i32) -> (i32, i32) {
    %c0_i32 = arith.constant 0 : i32
    %c0_i32_0 = arith.constant 0 : i32
    %c0_i32_1 = arith.constant 0 : i32
    return %c0_i32, %c0_i32_0 : i32, i32
  }
  func.func @transform_17(%arg0: i32) -> (i32, i32) {
    %c0_i32 = arith.constant 0 : i32
    %c0_i32_0 = arith.constant 0 : i32
    %c0_i32_1 = arith.constant 0 : i32
    return %c0_i32, %c0_i32_0 : i32, i32
  }
  func.func @transform_18(%arg0: i32) -> (i32, i32) {
    %c0_i32 = arith.constant 0 : i32
    %c0_i32_0 = arith.constant 0 : i32
    %c0_i32_1 = arith.constant 0 : i32
    return %c0_i32, %c0_i32_0 : i32, i32
  }
  func.func @transform_19(%arg0: i32) -> (i32, i32) {
    %c0_i32 = arith.constant 0 : i32
    %c0_i32_0 = arith.constant 0 : i32
    %c0_i32_1 = arith.constant 0 : i32
    return %c0_i32, %c0_i32_0 : i32, i32
  }
  func.func @transform_20(%arg0: i32) -> (i32, i32) {
    %c0_i32 = arith.constant 0 : i32
    %c0_i32_0 = arith.constant 0 : i32
    %c0_i32_1 = arith.constant 0 : i32
    return %c0_i32, %c0_i32_0 : i32, i32
  }
  func.func @transform_21(%arg0: i32) -> (i32, i32) {
    %c0_i32 = arith.constant 0 : i32
    %c0_i32_0 = arith.constant 0 : i32
    %c0_i32_1 = arith.constant 0 : i32
    return %c0_i32, %c0_i32_0 : i32, i32
  }
  func.func @transform_22(%arg0: i32) -> (i32, i32, i32) {
    %c0_i32 = arith.constant 0 : i32
    %c0_i32_0 = arith.constant 0 : i32
    %c0_i32_1 = arith.constant 0 : i32
    return %arg0, %c0_i32, %c0_i32_0 : i32, i32, i32
  }
}

</mosaic_0001>

<llo_original>
// kernel: tpu_custom_call.1
$region0: #{tpu_custom_call.1}
  #allocation0 [shape = 'u32[]', space=smem, size = 0x4, offset = 0x4, fixed_abs, tag = 'smem constant byte address 0x4 - core index']
  #allocation1 [shape = 'u32[72,128]{1,0:T(1,128)}', space=vmem, size = 0x9000, scoped, tag = 'internal scratch']
  #allocation2 [shape = 'f32[1,1]{1,0:T(1,128)S(1)}', space=vmem, size = 0x200, scoped, tag = 'scoped memory for tpu_custom_call.1']
  %s0 = inlined_call_operand.vmem [shape: f32[2,16,16], index: 0, kind: input, shape index: {}]
  %s1 = inlined_call_operand.vmem [shape: f32[2,16,3], index: 1, kind: input, shape index: {}]
  %s2 = inlined_call_operand.vmem [shape: f32[48,32], index: 2, kind: input, shape index: {}]
  %s3 = inlined_call_operand.vmem [shape: f32[1,32], index: 3, kind: input, shape index: {}]
  %s4 = inlined_call_operand.vmem [shape: f32[1,32], index: 4, kind: input, shape index: {}]
  %s5 = inlined_call_operand.vmem [shape: f32[1,32], index: 5, kind: input, shape index: {}]
  %s6 = inlined_call_operand.vmem [shape: f32[96,32], index: 6, kind: input, shape index: {}]
  %s7 = inlined_call_operand.vmem [shape: f32[1,32], index: 7, kind: input, shape index: {}]
  %s8 = inlined_call_operand.vmem [shape: f32[1,32], index: 8, kind: input, shape index: {}]
  %s9 = inlined_call_operand.vmem [shape: f32[1,32], index: 9, kind: input, shape index: {}]
  %s10 = inlined_call_operand.vmem [shape: f32[96,32], index: 10, kind: input, shape index: {}]
  %s11 = inlined_call_operand.vmem [shape: f32[1,32], index: 11, kind: input, shape index: {}]
  %s12 = inlined_call_operand.vmem [shape: f32[1,32], index: 12, kind: input, shape index: {}]
  %s13 = inlined_call_operand.vmem [shape: f32[1,32], index: 13, kind: input, shape index: {}]
  %s14 = inlined_call_operand.vmem [shape: f32[3,32], index: 14, kind: input, shape index: {}]
  %s15 = inlined_call_operand.vmem [shape: f32[3,32], index: 15, kind: input, shape index: {}]
  %s16 = inlined_call_operand.vmem [shape: f32[96,32], index: 16, kind: input, shape index: {}]
  %s17 = inlined_call_operand.vmem [shape: f32[1,32], index: 17, kind: input, shape index: {}]
  %s18 = inlined_call_operand.vmem [shape: f32[1,32], index: 18, kind: input, shape index: {}]
  %s19 = inlined_call_operand.vmem [shape: f32[1,32], index: 19, kind: input, shape index: {}]
  %s20 = inlined_call_operand.vmem [shape: f32[1,32], index: 20, kind: input, shape index: {}]
  %s21 = inlined_call_operand.<no memory space> [shape: f32[1,1], index: 21, kind: input, shape index: {}]
  %s22 = inlined_call_operand.hbm [shape: f32[2,1,32], index: 22, kind: output, shape index: {}]
  %s23 = sld [smem:[#allocation0]]
  $region121: #{tpu_custom_call.1} parent=0
    _
  %s25 = ssub.s32 1, %s23
  %s26 = scalar_select 0, %s25, %s23
  %v27 = vstv %s21
  %28 = vst [vmem:[#allocation2] sm:$0x1] %v27
  $region1: #{tpu_custom_call.1} parent=0
    #allocation3 [shape = 'u8[1024]{0}', space=vmem, size = 0x400, scoped, tag = 'output window, operand 0']
    #allocation4 [shape = 's32[2]{0}', space=sflag, size = 0x8, scoped, tag = 'scoped memory for tpu_custom_call.1']
    %29 = vsyncpa [#allocation4], 0
    %s30 = scalar_lea.sflag [#allocation4], 1
    %31 = vsyncpa %s30, 0
    loop: start=0, step=1, limit=4
    $region2: #{tpu_custom_call.1} parent=1 // loop_pre_header
      _
    $region3: #{tpu_custom_call.1} parent=1 // loop_header
      %s33 = sphi 0, %s37
      %p34 = scmp.ge.s32.totalorder %s33, 4
      %s43 = sphi 0, %s45
      %s46 = sphi 0, %s43
      %s47 = sphi 0, %s46
      %s63 = sphi 0, %s47
      %s69 = sphi 0, %s71
      %s72 = sphi 0, %s69
      %s73 = sphi 0, %s72
      %s89 = sphi 0, %s73
      %s93 = sphi 0, %s93
      %s95 = sphi 0, %s93
      %s96 = sphi 0, %s95
      %s110 = sphi 0, %s96
      %s114 = sphi 0, %s114
      %s116 = sphi 0, %s114
      %s117 = sphi 0, %s116
      %s131 = sphi 0, %s117
      %s135 = sphi 0, %s135
      %s137 = sphi 0, %s135
      %s138 = sphi 0, %s137
      %s152 = sphi 0, %s138
      %s156 = sphi 0, %s156
      %s158 = sphi 0, %s156
      %s159 = sphi 0, %s158
      %s173 = sphi 0, %s159
      %s177 = sphi 0, %s177
      %s179 = sphi 0, %s177
      %s180 = sphi 0, %s179
      %s194 = sphi 0, %s180
      %s198 = sphi 0, %s198
      %s200 = sphi 0, %s198
      %s201 = sphi 0, %s200
      %s215 = sphi 0, %s201
      %s219 = sphi 0, %s219
      %s221 = sphi 0, %s219
      %s222 = sphi 0, %s221
      %s236 = sphi 0, %s222
      %s240 = sphi 0, %s240
      %s242 = sphi 0, %s240
      %s243 = sphi 0, %s242
      %s257 = sphi 0, %s243
      %s261 = sphi 0, %s261
      %s263 = sphi 0, %s261
      %s264 = sphi 0, %s263
      %s278 = sphi 0, %s264
      %s282 = sphi 0, %s282
      %s284 = sphi 0, %s282
      %s285 = sphi 0, %s284
      %s299 = sphi 0, %s285
      %s303 = sphi 0, %s303
      %s305 = sphi 0, %s303
      %s306 = sphi 0, %s305
      %s320 = sphi 0, %s306
      %s324 = sphi 0, %s324
      %s326 = sphi 0, %s324
      %s327 = sphi 0, %s326
      %s341 = sphi 0, %s327
      %s345 = sphi 0, %s345
      %s347 = sphi 0, %s345
      %s348 = sphi 0, %s347
      %s362 = sphi 0, %s348
      %s366 = sphi 0, %s366
      %s368 = sphi 0, %s366
      %s369 = sphi 0, %s368
      %s383 = sphi 0, %s369
      %s387 = sphi 0, %s387
      %s389 = sphi 0, %s387
      %s390 = sphi 0, %s389
      %s404 = sphi 0, %s390
      %s408 = sphi 0, %s408
      %s410 = sphi 0, %s408
      %s411 = sphi 0, %s410
      %s425 = sphi 0, %s411
      %s429 = sphi 0, %s429
      %s431 = sphi 0, %s429
      %s432 = sphi 0, %s431
      %s446 = sphi 0, %s432
      %s450 = sphi 0, %s450
      %s452 = sphi 0, %s450
      %s453 = sphi 0, %s452
      %s467 = sphi 0, %s453
      %s471 = sphi 0, %s471
      %s473 = sphi 0, %s471
      %s474 = sphi 0, %s473
      %s488 = sphi 0, %s474
      %s492 = sphi 0, %s492
      %s494 = sphi 0, %s492
      %s495 = sphi 0, %s494
      %s509 = sphi 0, %s495
      %s515 = sphi 0, %s517
      %s518 = sphi 0, %s515
      %s519 = sphi 0, %s518
      %s535 = sphi 0, %s519
    $region4: #{tpu_custom_call.1} parent=1 // loop_header_branch
      %36 = sbr.rel (%p34) target = $region8
    $region5: #{tpu_custom_call.1} parent=1 // loop_body
      %s38 = ssub.s32 %s33, 1
      %s39 = ssub.s32 %s33, 2
      %s40 = sadd.s32 %s33, 1
      %s41 = ssub.s32 %s33, %s40
      %p42 = scmp.eq.s32.totalorder %s41, 0
      %s44 = sadd.s32 %s43, 1
      %s45 = scalar_select %p42, %s43, %s44
      %p48 = pneg %p42
      %p49 = scmp.eq.s32.totalorder %s33, 1
      %p50 = por %p48, %p49
      %p51 = scmp.ne.s32.totalorder %s43, %s46
      %p52 = scmp.eq.s32.totalorder %s33, 0
      %p53 = por %p51, %p52
      %p54 = scmp.ne.s32.totalorder %s43, %s46
      %p55 = scmp.eq.s32.totalorder %s38, 1
      %p56 = por %p54, %p55
      %p57 = scmp.ne.s32.totalorder %s46, %s47
      %p58 = scmp.eq.s32.totalorder %s38, 0
      %p59 = por %p57, %p58
      %p60 = scmp.ne.s32.totalorder %s46, %s47
      %p61 = scmp.eq.s32.totalorder %s39, 1
      %p62 = por %p60, %p61
      %p64 = scmp.ne.s32.totalorder %s47, %s63
      %p65 = scmp.eq.s32.totalorder %s39, 0
      %p66 = por %p64, %p65
      %s67 = ssub.s32 %s33, %s40
      %p68 = scmp.eq.s32.totalorder %s67, 0
      %s70 = sadd.s32 %s69, 1
      %s71 = scalar_select %p68, %s69, %s70
      %p74 = pneg %p68
      %p75 = scmp.eq.s32.totalorder %s33, 1
      %p76 = por %p74, %p75
      %p77 = scmp.ne.s32.totalorder %s69, %s72
      %p78 = scmp.eq.s32.totalorder %s33, 0
      %p79 = por %p77, %p78
      %p80 = scmp.ne.s32.totalorder %s69, %s72
      %p81 = scmp.eq.s32.totalorder %s38, 1
      %p82 = por %p80, %p81
      %p83 = scmp.ne.s32.totalorder %s72, %s73
      %p84 = scmp.eq.s32.totalorder %s38, 0
      %p85 = por %p83, %p84
      %p86 = scmp.ne.s32.totalorder %s72, %s73
      %p87 = scmp.eq.s32.totalorder %s39, 1
      %p88 = por %p86, %p87
      %p90 = scmp.ne.s32.totalorder %s73, %s89
      %p91 = scmp.eq.s32.totalorder %s39, 0
      %p92 = por %p90, %p91
      %s94 = sadd.s32 %s93, 1
      %p97 = scmp.eq.s32.totalorder %s33, 1
      %p98 = scmp.ne.s32.totalorder %s93, %s95
      %p99 = scmp.eq.s32.totalorder %s33, 0
      %p100 = por %p98, %p99
      %p101 = scmp.ne.s32.totalorder %s93, %s95
      %p102 = scmp.eq.s32.totalorder %s38, 1
      %p103 = por %p101, %p102
      %p104 = scmp.ne.s32.totalorder %s95, %s96
      %p105 = scmp.eq.s32.totalorder %s38, 0
      %p106 = por %p104, %p105
      %p107 = scmp.ne.s32.totalorder %s95, %s96
      %p108 = scmp.eq.s32.totalorder %s39, 1
      %p109 = por %p107, %p108
      %p111 = scmp.ne.s32.totalorder %s96, %s110
      %p112 = scmp.eq.s32.totalorder %s39, 0
      %p113 = por %p111, %p112
      %s115 = sadd.s32 %s114, 1
      %p118 = scmp.eq.s32.totalorder %s33, 1
      %p119 = scmp.ne.s32.totalorder %s114, %s116
      %p120 = scmp.eq.s32.totalorder %s33, 0
      %p121 = por %p119, %p120
      %p122 = scmp.ne.s32.totalorder %s114, %s116
      %p123 = scmp.eq.s32.totalorder %s38, 1
      %p124 = por %p122, %p123
      %p125 = scmp.ne.s32.totalorder %s116, %s117
      %p126 = scmp.eq.s32.totalorder %s38, 0
      %p127 = por %p125, %p126
      %p128 = scmp.ne.s32.totalorder %s116, %s117
      %p129 = scmp.eq.s32.totalorder %s39, 1
      %p130 = por %p128, %p129
      %p132 = scmp.ne.s32.totalorder %s117, %s131
      %p133 = scmp.eq.s32.totalorder %s39, 0
      %p134 = por %p132, %p133
      %s136 = sadd.s32 %s135, 1
      %p139 = scmp.eq.s32.totalorder %s33, 1
      %p140 = scmp.ne.s32.totalorder %s135, %s137
      %p141 = scmp.eq.s32.totalorder %s33, 0
      %p142 = por %p140, %p141
      %p143 = scmp.ne.s32.totalorder %s135, %s137
      %p144 = scmp.eq.s32.totalorder %s38, 1
      %p145 = por %p143, %p144
      %p146 = scmp.ne.s32.totalorder %s137, %s138
      %p147 = scmp.eq.s32.totalorder %s38, 0
      %p148 = por %p146, %p147
      %p149 = scmp.ne.s32.totalorder %s137, %s138
      %p150 = scmp.eq.s32.totalorder %s39, 1
      %p151 = por %p149, %p150
      %p153 = scmp.ne.s32.totalorder %s138, %s152
      %p154 = scmp.eq.s32.totalorder %s39, 0
      %p155 = por %p153, %p154
      %s157 = sadd.s32 %s156, 1
      %p160 = scmp.eq.s32.totalorder %s33, 1
      %p161 = scmp.ne.s32.totalorder %s156, %s158
      %p162 = scmp.eq.s32.totalorder %s33, 0
      %p163 = por %p161, %p162
      %p164 = scmp.ne.s32.totalorder %s156, %s158
      %p165 = scmp.eq.s32.totalorder %s38, 1
      %p166 = por %p164, %p165
      %p167 = scmp.ne.s32.totalorder %s158, %s159
      %p168 = scmp.eq.s32.totalorder %s38, 0
      %p169 = por %p167, %p168
      %p170 = scmp.ne.s32.totalorder %s158, %s159
      %p171 = scmp.eq.s32.totalorder %s39, 1
      %p172 = por %p170, %p171
      %p174 = scmp.ne.s32.totalorder %s159, %s173
      %p175 = scmp.eq.s32.totalorder %s39, 0
      %p176 = por %p174, %p175
      %s178 = sadd.s32 %s177, 1
      %p181 = scmp.eq.s32.totalorder %s33, 1
      %p182 = scmp.ne.s32.totalorder %s177, %s179
      %p183 = scmp.eq.s32.totalorder %s33, 0
      %p184 = por %p182, %p183
      %p185 = scmp.ne.s32.totalorder %s177, %s179
      %p186 = scmp.eq.s32.totalorder %s38, 1
      %p187 = por %p185, %p186
      %p188 = scmp.ne.s32.totalorder %s179, %s180
      %p189 = scmp.eq.s32.totalorder %s38, 0
      %p190 = por %p188, %p189
      %p191 = scmp.ne.s32.totalorder %s179, %s180
      %p192 = scmp.eq.s32.totalorder %s39, 1
      %p193 = por %p191, %p192
      %p195 = scmp.ne.s32.totalorder %s180, %s194
      %p196 = scmp.eq.s32.totalorder %s39, 0
      %p197 = por %p195, %p196
      %s199 = sadd.s32 %s198, 1
      %p202 = scmp.eq.s32.totalorder %s33, 1
      %p203 = scmp.ne.s32.totalorder %s198, %s200
      %p204 = scmp.eq.s32.totalorder %s33, 0
      %p205 = por %p203, %p204
      %p206 = scmp.ne.s32.totalorder %s198, %s200
      %p207 = scmp.eq.s32.totalorder %s38, 1
      %p208 = por %p206, %p207
      %p209 = scmp.ne.s32.totalorder %s200, %s201
      %p210 = scmp.eq.s32.totalorder %s38, 0
      %p211 = por %p209, %p210
      %p212 = scmp.ne.s32.totalorder %s200, %s201
      %p213 = scmp.eq.s32.totalorder %s39, 1
      %p214 = por %p212, %p213
      %p216 = scmp.ne.s32.totalorder %s201, %s215
      %p217 = scmp.eq.s32.totalorder %s39, 0
      %p218 = por %p216, %p217
      %s220 = sadd.s32 %s219, 1
      %p223 = scmp.eq.s32.totalorder %s33, 1
      %p224 = scmp.ne.s32.totalorder %s219, %s221
      %p225 = scmp.eq.s32.totalorder %s33, 0
      %p226 = por %p224, %p225
      %p227 = scmp.ne.s32.totalorder %s219, %s221
      %p228 = scmp.eq.s32.totalorder %s38, 1
      %p229 = por %p227, %p228
      %p230 = scmp.ne.s32.totalorder %s221, %s222
      %p231 = scmp.eq.s32.totalorder %s38, 0
      %p232 = por %p230, %p231
      %p233 = scmp.ne.s32.totalorder %s221, %s222
      %p234 = scmp.eq.s32.totalorder %s39, 1
      %p235 = por %p233, %p234
      %p237 = scmp.ne.s32.totalorder %s222, %s236
      %p238 = scmp.eq.s32.totalorder %s39, 0
      %p239 = por %p237, %p238
      %s241 = sadd.s32 %s240, 1
      %p244 = scmp.eq.s32.totalorder %s33, 1
      %p245 = scmp.ne.s32.totalorder %s240, %s242
      %p246 = scmp.eq.s32.totalorder %s33, 0
      %p247 = por %p245, %p246
      %p248 = scmp.ne.s32.totalorder %s240, %s242
      %p249 = scmp.eq.s32.totalorder %s38, 1
      %p250 = por %p248, %p249
      %p251 = scmp.ne.s32.totalorder %s242, %s243
      %p252 = scmp.eq.s32.totalorder %s38, 0
      %p253 = por %p251, %p252
      %p254 = scmp.ne.s32.totalorder %s242, %s243
      %p255 = scmp.eq.s32.totalorder %s39, 1
      %p256 = por %p254, %p255
      %p258 = scmp.ne.s32.totalorder %s243, %s257
      %p259 = scmp.eq.s32.totalorder %s39, 0
      %p260 = por %p258, %p259
      %s262 = sadd.s32 %s261, 1
      %p265 = scmp.eq.s32.totalorder %s33, 1
      %p266 = scmp.ne.s32.totalorder %s261, %s263
      %p267 = scmp.eq.s32.totalorder %s33, 0
      %p268 = por %p266, %p267
      %p269 = scmp.ne.s32.totalorder %s261, %s263
      %p270 = scmp.eq.s32.totalorder %s38, 1
      %p271 = por %p269, %p270
      %p272 = scmp.ne.s32.totalorder %s263, %s264
      %p273 = scmp.eq.s32.totalorder %s38, 0
      %p274 = por %p272, %p273
      %p275 = scmp.ne.s32.totalorder %s263, %s264
      %p276 = scmp.eq.s32.totalorder %s39, 1
      %p277 = por %p275, %p276
      %p279 = scmp.ne.s32.totalorder %s264, %s278
      %p280 = scmp.eq.s32.totalorder %s39, 0
      %p281 = por %p279, %p280
      %s283 = sadd.s32 %s282, 1
      %p286 = scmp.eq.s32.totalorder %s33, 1
      %p287 = scmp.ne.s32.totalorder %s282, %s284
      %p288 = scmp.eq.s32.totalorder %s33, 0
      %p289 = por %p287, %p288
      %p290 = scmp.ne.s32.totalorder %s282, %s284
      %p291 = scmp.eq.s32.totalorder %s38, 1
      %p292 = por %p290, %p291
      %p293 = scmp.ne.s32.totalorder %s284, %s285
      %p294 = scmp.eq.s32.totalorder %s38, 0
      %p295 = por %p293, %p294
      %p296 = scmp.ne.s32.totalorder %s284, %s285
      %p297 = scmp.eq.s32.totalorder %s39, 1
      %p298 = por %p296, %p297
      %p300 = scmp.ne.s32.totalorder %s285, %s299
      %p301 = scmp.eq.s32.totalorder %s39, 0
      %p302 = por %p300, %p301
      %s304 = sadd.s32 %s303, 1
      %p307 = scmp.eq.s32.totalorder %s33, 1
      %p308 = scmp.ne.s32.totalorder %s303, %s305
      %p309 = scmp.eq.s32.totalorder %s33, 0
      %p310 = por %p308, %p309
      %p311 = scmp.ne.s32.totalorder %s303, %s305
      %p312 = scmp.eq.s32.totalorder %s38, 1
      %p313 = por %p311, %p312
      %p314 = scmp.ne.s32.totalorder %s305, %s306
      %p315 = scmp.eq.s32.totalorder %s38, 0
      %p316 = por %p314, %p315
      %p317 = scmp.ne.s32.totalorder %s305, %s306
      %p318 = scmp.eq.s32.totalorder %s39, 1
      %p319 = por %p317, %p318
      %p321 = scmp.ne.s32.totalorder %s306, %s320
      %p322 = scmp.eq.s32.totalorder %s39, 0
      %p323 = por %p321, %p322
      %s325 = sadd.s32 %s324, 1
      %p328 = scmp.eq.s32.totalorder %s33, 1
      %p329 = scmp.ne.s32.totalorder %s324, %s326
      %p330 = scmp.eq.s32.totalorder %s33, 0
      %p331 = por %p329, %p330
      %p332 = scmp.ne.s32.totalorder %s324, %s326
      %p333 = scmp.eq.s32.totalorder %s38, 1
      %p334 = por %p332, %p333
      %p335 = scmp.ne.s32.totalorder %s326, %s327
      %p336 = scmp.eq.s32.totalorder %s38, 0
      %p337 = por %p335, %p336
      %p338 = scmp.ne.s32.totalorder %s326, %s327
      %p339 = scmp.eq.s32.totalorder %s39, 1
      %p340 = por %p338, %p339
      %p342 = scmp.ne.s32.totalorder %s327, %s341
      %p343 = scmp.eq.s32.totalorder %s39, 0
      %p344 = por %p342, %p343
      %s346 = sadd.s32 %s345, 1
      %p349 = scmp.eq.s32.totalorder %s33, 1
      %p350 = scmp.ne.s32.totalorder %s345, %s347
      %p351 = scmp.eq.s32.totalorder %s33, 0
      %p352 = por %p350, %p351
      %p353 = scmp.ne.s32.totalorder %s345, %s347
      %p354 = scmp.eq.s32.totalorder %s38, 1
      %p355 = por %p353, %p354
      %p356 = scmp.ne.s32.totalorder %s347, %s348
      %p357 = scmp.eq.s32.totalorder %s38, 0
      %p358 = por %p356, %p357
      %p359 = scmp.ne.s32.totalorder %s347, %s348
      %p360 = scmp.eq.s32.totalorder %s39, 1
      %p361 = por %p359, %p360
      %p363 = scmp.ne.s32.totalorder %s348, %s362
      %p364 = scmp.eq.s32.totalorder %s39, 0
      %p365 = por %p363, %p364
      %s367 = sadd.s32 %s366, 1
      %p370 = scmp.eq.s32.totalorder %s33, 1
      %p371 = scmp.ne.s32.totalorder %s366, %s368
      %p372 = scmp.eq.s32.totalorder %s33, 0
      %p373 = por %p371, %p372
      %p374 = scmp.ne.s32.totalorder %s366, %s368
      %p375 = scmp.eq.s32.totalorder %s38, 1
      %p376 = por %p374, %p375
      %p377 = scmp.ne.s32.totalorder %s368, %s369
      %p378 = scmp.eq.s32.totalorder %s38, 0
      %p379 = por %p377, %p378
      %p380 = scmp.ne.s32.totalorder %s368, %s369
      %p381 = scmp.eq.s32.totalorder %s39, 1
      %p382 = por %p380, %p381
      %p384 = scmp.ne.s32.totalorder %s369, %s383
      %p385 = scmp.eq.s32.totalorder %s39, 0
      %p386 = por %p384, %p385
      %s388 = sadd.s32 %s387, 1
      %p391 = scmp.eq.s32.totalorder %s33, 1
      %p392 = scmp.ne.s32.totalorder %s387, %s389
      %p393 = scmp.eq.s32.totalorder %s33, 0
      %p394 = por %p392, %p393
      %p395 = scmp.ne.s32.totalorder %s387, %s389
      %p396 = scmp.eq.s32.totalorder %s38, 1
      %p397 = por %p395, %p396
      %p398 = scmp.ne.s32.totalorder %s389, %s390
      %p399 = scmp.eq.s32.totalorder %s38, 0
      %p400 = por %p398, %p399
      %p401 = scmp.ne.s32.totalorder %s389, %s390
      %p402 = scmp.eq.s32.totalorder %s39, 1
      %p403 = por %p401, %p402
      %p405 = scmp.ne.s32.totalorder %s390, %s404
      %p406 = scmp.eq.s32.totalorder %s39, 0
      %p407 = por %p405, %p406
      %s409 = sadd.s32 %s408, 1
      %p412 = scmp.eq.s32.totalorder %s33, 1
      %p413 = scmp.ne.s32.totalorder %s408, %s410
      %p414 = scmp.eq.s32.totalorder %s33, 0
      %p415 = por %p413, %p414
      %p416 = scmp.ne.s32.totalorder %s408, %s410
      %p417 = scmp.eq.s32.totalorder %s38, 1
      %p418 = por %p416, %p417
      %p419 = scmp.ne.s32.totalorder %s410, %s411
      %p420 = scmp.eq.s32.totalorder %s38, 0
      %p421 = por %p419, %p420
      %p422 = scmp.ne.s32.totalorder %s410, %s411
      %p423 = scmp.eq.s32.totalorder %s39, 1
      %p424 = por %p422, %p423
      %p426 = scmp.ne.s32.totalorder %s411, %s425
      %p427 = scmp.eq.s32.totalorder %s39, 0
      %p428 = por %p426, %p427
      %s430 = sadd.s32 %s429, 1
      %p433 = scmp.eq.s32.totalorder %s33, 1
      %p434 = scmp.ne.s32.totalorder %s429, %s431
      %p435 = scmp.eq.s32.totalorder %s33, 0
      %p436 = por %p434, %p435
      %p437 = scmp.ne.s32.totalorder %s429, %s431
      %p438 = scmp.eq.s32.totalorder %s38, 1
      %p439 = por %p437, %p438
      %p440 = scmp.ne.s32.totalorder %s431, %s432
      %p441 = scmp.eq.s32.totalorder %s38, 0
      %p442 = por %p440, %p441
      %p443 = scmp.ne.s32.totalorder %s431, %s432
      %p444 = scmp.eq.s32.totalorder %s39, 1
      %p445 = por %p443, %p444
      %p447 = scmp.ne.s32.totalorder %s432, %s446
      %p448 = scmp.eq.s32.totalorder %s39, 0
      %p449 = por %p447, %p448
      %s451 = sadd.s32 %s450, 1
      %p454 = scmp.eq.s32.totalorder %s33, 1
      %p455 = scmp.ne.s32.totalorder %s450, %s452
      %p456 = scmp.eq.s32.totalorder %s33, 0
      %p457 = por %p455, %p456
      %p458 = scmp.ne.s32.totalorder %s450, %s452
      %p459 = scmp.eq.s32.totalorder %s38, 1
      %p460 = por %p458, %p459
      %p461 = scmp.ne.s32.totalorder %s452, %s453
      %p462 = scmp.eq.s32.totalorder %s38, 0
      %p463 = por %p461, %p462
      %p464 = scmp.ne.s32.totalorder %s452, %s453
      %p465 = scmp.eq.s32.totalorder %s39, 1
      %p466 = por %p464, %p465
      %p468 = scmp.ne.s32.totalorder %s453, %s467
      %p469 = scmp.eq.s32.totalorder %s39, 0
      %p470 = por %p468, %p469
      %s472 = sadd.s32 %s471, 1
      %p475 = scmp.eq.s32.totalorder %s33, 1
      %p476 = scmp.ne.s32.totalorder %s471, %s473
      %p477 = scmp.eq.s32.totalorder %s33, 0
      %p478 = por %p476, %p477
      %p479 = scmp.ne.s32.totalorder %s471, %s473
      %p480 = scmp.eq.s32.totalorder %s38, 1
      %p481 = por %p479, %p480
      %p482 = scmp.ne.s32.totalorder %s473, %s474
      %p483 = scmp.eq.s32.totalorder %s38, 0
      %p484 = por %p482, %p483
      %p485 = scmp.ne.s32.totalorder %s473, %s474
      %p486 = scmp.eq.s32.totalorder %s39, 1
      %p487 = por %p485, %p486
      %p489 = scmp.ne.s32.totalorder %s474, %s488
      %p490 = scmp.eq.s32.totalorder %s39, 0
      %p491 = por %p489, %p490
      %s493 = sadd.s32 %s492, 1
      %p496 = scmp.eq.s32.totalorder %s33, 1
      %p497 = scmp.ne.s32.totalorder %s492, %s494
      %p498 = scmp.eq.s32.totalorder %s33, 0
      %p499 = por %p497, %p498
      %p500 = scmp.ne.s32.totalorder %s492, %s494
      %p501 = scmp.eq.s32.totalorder %s38, 1
      %p502 = por %p500, %p501
      %p503 = scmp.ne.s32.totalorder %s494, %s495
      %p504 = scmp.eq.s32.totalorder %s38, 0
      %p505 = por %p503, %p504
      %p506 = scmp.ne.s32.totalorder %s494, %s495
      %p507 = scmp.eq.s32.totalorder %s39, 1
      %p508 = por %p506, %p507
      %p510 = scmp.ne.s32.totalorder %s495, %s509
      %p511 = scmp.eq.s32.totalorder %s39, 0
      %p512 = por %p510, %p511
      %s513 = ssub.s32 %s33, %s40
      %p514 = scmp.eq.s32.totalorder %s513, 0
      %s516 = sadd.s32 %s515, 1
      %s517 = scalar_select %p514, %s515, %s516
      %p520 = pneg %p514
      %p521 = scmp.eq.s32.totalorder %s33, 1
      %p522 = por %p520, %p521
      %p523 = scmp.ne.s32.totalorder %s515, %s518
      %p524 = scmp.eq.s32.totalorder %s33, 0
      %p525 = por %p523, %p524
      %p526 = scmp.ne.s32.totalorder %s515, %s518
      %p527 = scmp.eq.s32.totalorder %s38, 1
      %p528 = por %p526, %p527
      %p529 = scmp.ne.s32.totalorder %s518, %s519
      %p530 = scmp.eq.s32.totalorder %s38, 0
      %p531 = por %p529, %p530
      %p532 = scmp.ne.s32.totalorder %s518, %s519
      %p533 = scmp.eq.s32.totalorder %s39, 1
      %p534 = por %p532, %p533
      %p536 = scmp.ne.s32.totalorder %s519, %s535
      %p537 = scmp.eq.s32.totalorder %s39, 0
      %p538 = por %p536, %p537
      %p539 = scmp.le.s32.totalorder 1, %s33
      %p540 = scmp.lt.s32.totalorder %s33, 3
      %p541 = pnand %p539, %p540
      %p542 = pneg %p541
      // Predicated region
      $region9: #{tpu_custom_call.1} parent=5 // pred_check
        _
      $region10: #{tpu_custom_call.1} parent=5 // pred_check_branch
        %544 = sbr.rel (%p541) target = $region12
      $region11: #{tpu_custom_call.1} parent=5 // pred_region
        %s545 = ssub.s32 %s33, 1
        // Predicated region
        $region13: #{tpu_custom_call.1} parent=11 // pred_check
          %p546 = pneg %p106
        $region14: #{tpu_custom_call.1} parent=11 // pred_check_branch
          %548 = sbr.rel (%p546) target = $region16
        $region15: #{tpu_custom_call.1} parent=11 // pred_region
          _
        $region16: #{tpu_custom_call.1} parent=11 // pred_fallthru
          _
        // Predicated region
        $region17: #{tpu_custom_call.1} parent=11 // pred_check
          %p549 = pneg %p127
        $region18: #{tpu_custom_call.1} parent=11 // pred_check_branch
          %551 = sbr.rel (%p549) target = $region20
        $region19: #{tpu_custom_call.1} parent=11 // pred_region
          _
        $region20: #{tpu_custom_call.1} parent=11 // pred_fallthru
          _
        // Predicated region
        $region21: #{tpu_custom_call.1} parent=11 // pred_check
          %p552 = pneg %p148
        $region22: #{tpu_custom_call.1} parent=11 // pred_check_branch
          %554 = sbr.rel (%p552) target = $region24
        $region23: #{tpu_custom_call.1} parent=11 // pred_region
          _
        $region24: #{tpu_custom_call.1} parent=11 // pred_fallthru
          _
        // Predicated region
        $region25: #{tpu_custom_call.1} parent=11 // pred_check
          %p555 = pneg %p169
        $region26: #{tpu_custom_call.1} parent=11 // pred_check_branch
          %557 = sbr.rel (%p555) target = $region28
        $region27: #{tpu_custom_call.1} parent=11 // pred_region
          _
        $region28: #{tpu_custom_call.1} parent=11 // pred_fallthru
          _
        // Predicated region
        $region29: #{tpu_custom_call.1} parent=11 // pred_check
          %p558 = pneg %p190
        $region30: #{tpu_custom_call.1} parent=11 // pred_check_branch
          %560 = sbr.rel (%p558) target = $region32
        $region31: #{tpu_custom_call.1} parent=11 // pred_region
          _
        $region32: #{tpu_custom_call.1} parent=11 // pred_fallthru
          _
        // Predicated region
        $region33: #{tpu_custom_call.1} parent=11 // pred_check
          %p561 = pneg %p211
        $region34: #{tpu_custom_call.1} parent=11 // pred_check_branch
          %563 = sbr.rel (%p561) target = $region36
        $region35: #{tpu_custom_call.1} parent=11 // pred_region
          _
        $region36: #{tpu_custom_call.1} parent=11 // pred_fallthru
          _
        // Predicated region
        $region37: #{tpu_custom_call.1} parent=11 // pred_check
          %p564 = pneg %p232
        $region38: #{tpu_custom_call.1} parent=11 // pred_check_branch
          %566 = sbr.rel (%p564) target = $region40
        $region39: #{tpu_custom_call.1} parent=11 // pred_region
          _
        $region40: #{tpu_custom_call.1} parent=11 // pred_fallthru
          _
        // Predicated region
        $region41: #{tpu_custom_call.1} parent=11 // pred_check
          %p567 = pneg %p253
        $region42: #{tpu_custom_call.1} parent=11 // pred_check_branch
          %569 = sbr.rel (%p567) target = $region44
        $region43: #{tpu_custom_call.1} parent=11 // pred_region
          _
        $region44: #{tpu_custom_call.1} parent=11 // pred_fallthru
          _
        // Predicated region
        $region45: #{tpu_custom_call.1} parent=11 // pred_check
          %p570 = pneg %p274
        $region46: #{tpu_custom_call.1} parent=11 // pred_check_branch
          %572 = sbr.rel (%p570) target = $region48
        $region47: #{tpu_custom_call.1} parent=11 // pred_region
          _
        $region48: #{tpu_custom_call.1} parent=11 // pred_fallthru
          _
        // Predicated region
        $region49: #{tpu_custom_call.1} parent=11 // pred_check
          %p573 = pneg %p295
        $region50: #{tpu_custom_call.1} parent=11 // pred_check_branch
          %575 = sbr.rel (%p573) target = $region52
        $region51: #{tpu_custom_call.1} parent=11 // pred_region
          _
        $region52: #{tpu_custom_call.1} parent=11 // pred_fallthru
          _
        // Predicated region
        $region53: #{tpu_custom_call.1} parent=11 // pred_check
          %p576 = pneg %p316
        $region54: #{tpu_custom_call.1} parent=11 // pred_check_branch
          %578 = sbr.rel (%p576) target = $region56
        $region55: #{tpu_custom_call.1} parent=11 // pred_region
          _
        $region56: #{tpu_custom_call.1} parent=11 // pred_fallthru
          _
        // Predicated region
        $region57: #{tpu_custom_call.1} parent=11 // pred_check
          %p579 = pneg %p337
        $region58: #{tpu_custom_call.1} parent=11 // pred_check_branch
          %581 = sbr.rel (%p579) target = $region60
        $region59: #{tpu_custom_call.1} parent=11 // pred_region
          _
        $region60: #{tpu_custom_call.1} parent=11 // pred_fallthru
          _
        // Predicated region
        $region61: #{tpu_custom_call.1} parent=11 // pred_check
          %p582 = pneg %p358
        $region62: #{tpu_custom_call.1} parent=11 // pred_check_branch
          %584 = sbr.rel (%p582) target = $region64
        $region63: #{tpu_custom_call.1} parent=11 // pred_region
          _
        $region64: #{tpu_custom_call.1} parent=11 // pred_fallthru
          _
        // Predicated region
        $region65: #{tpu_custom_call.1} parent=11 // pred_check
          %p585 = pneg %p379
        $region66: #{tpu_custom_call.1} parent=11 // pred_check_branch
          %587 = sbr.rel (%p585) target = $region68
        $region67: #{tpu_custom_call.1} parent=11 // pred_region
          _
        $region68: #{tpu_custom_call.1} parent=11 // pred_fallthru
          _
        // Predicated region
        $region69: #{tpu_custom_call.1} parent=11 // pred_check
          %p588 = pneg %p400
        $region70: #{tpu_custom_call.1} parent=11 // pred_check_branch
          %590 = sbr.rel (%p588) target = $region72
        $region71: #{tpu_custom_call.1} parent=11 // pred_region
          _
        $region72: #{tpu_custom_call.1} parent=11 // pred_fallthru
          _
        // Predicated region
        $region73: #{tpu_custom_call.1} parent=11 // pred_check
          %p591 = pneg %p421
        $region74: #{tpu_custom_call.1} parent=11 // pred_check_branch
          %593 = sbr.rel (%p591) target = $region76
        $region75: #{tpu_custom_call.1} parent=11 // pred_region
          _
        $region76: #{tpu_custom_call.1} parent=11 // pred_fallthru
          _
        // Predicated region
        $region77: #{tpu_custom_call.1} parent=11 // pred_check
          %p594 = pneg %p442
        $region78: #{tpu_custom_call.1} parent=11 // pred_check_branch
          %596 = sbr.rel (%p594) target = $region80
        $region79: #{tpu_custom_call.1} parent=11 // pred_region
          _
        $region80: #{tpu_custom_call.1} parent=11 // pred_fallthru
          _
        // Predicated region
        $region81: #{tpu_custom_call.1} parent=11 // pred_check
          %p597 = pneg %p463
        $region82: #{tpu_custom_call.1} parent=11 // pred_check_branch
          %599 = sbr.rel (%p597) target = $region84
        $region83: #{tpu_custom_call.1} parent=11 // pred_region
          _
        $region84: #{tpu_custom_call.1} parent=11 // pred_fallthru
          _
        // Predicated region
        $region85: #{tpu_custom_call.1} parent=11 // pred_check
          %p600 = pneg %p484
        $region86: #{tpu_custom_call.1} parent=11 // pred_check_branch
          %602 = sbr.rel (%p600) target = $region88
        $region87: #{tpu_custom_call.1} parent=11 // pred_region
          _
        $region88: #{tpu_custom_call.1} parent=11 // pred_fallthru
          _
        // Predicated region
        $region89: #{tpu_custom_call.1} parent=11 // pred_check
          %p603 = pneg %p505
        $region90: #{tpu_custom_call.1} parent=11 // pred_check_branch
          %605 = sbr.rel (%p603) target = $region92
        $region91: #{tpu_custom_call.1} parent=11 // pred_region
          _
        $region92: #{tpu_custom_call.1} parent=11 // pred_fallthru
          _
      $region12: #{tpu_custom_call.1} parent=5 // pred_fallthru
        _
      %p606 = scmp.lt.s32.totalorder %s33, 2
      // Predicated region
      $region93: #{tpu_custom_call.1} parent=5 // pred_check
        %p607 = pneg %p606
      $region94: #{tpu_custom_call.1} parent=5 // pred_check_branch
        %609 = sbr.rel (%p607) target = $region96
      $region95: #{tpu_custom_call.1} parent=5 // pred_region
        // Predicated region
        $region97: #{tpu_custom_call.1} parent=95 // pred_check
          %p610 = pneg %p53
        $region98: #{tpu_custom_call.1} parent=95 // pred_check_branch
          %612 = sbr.rel (%p610) target = $region100
        $region99: #{tpu_custom_call.1} parent=95 // pred_region
          %p613 = scmp.lt.s32.totalorder %s33, 1
          %s614 = scalar_select %p613, %s33, 1
          %s615 = smul.addr %s614, 2
          %s616 = smul.addr %s615, 8
          %s617 = scalar_lea.vmem %s0, %s616
        $region100: #{tpu_custom_call.1} parent=95 // pred_fallthru
          _
        // Predicated region
        $region101: #{tpu_custom_call.1} parent=95 // pred_check
          %p618 = pneg %p79
        $region102: #{tpu_custom_call.1} parent=95 // pred_check_branch
          %620 = sbr.rel (%p618) target = $region104
        $region103: #{tpu_custom_call.1} parent=95 // pred_region
          %p621 = scmp.lt.s32.totalorder %s33, 1
          %s622 = scalar_select %p621, %s33, 1
          %s623 = smul.addr %s622, 2
          %s624 = smul.addr %s623, 8
          %s625 = scalar_lea.vmem %s1, %s624
        $region104: #{tpu_custom_call.1} parent=95 // pred_fallthru
          _
      $region96: #{tpu_custom_call.1} parent=5 // pred_fallthru
        _
      %p626 = scmp.le.s32.totalorder 1, %s33
      %p627 = scmp.lt.s32.totalorder %s33, 3
      %p628 = pnand %p626, %p627
      %p629 = pneg %p628
      // Predicated region
      $region105: #{tpu_custom_call.1} parent=5 // pred_check
        _
      $region106: #{tpu_custom_call.1} parent=5 // pred_check_branch
        %631 = sbr.rel (%p628) target = $region108
      $region107: #{tpu_custom_call.1} parent=5 // pred_region
        %s632 = ssub.s32 %s33, 1
        %p633 = scmp.lt.s32.totalorder %s38, 1
        %s634 = scalar_select %p633, %s38, 1
        %s635 = smul.addr %s634, 2
        %s636 = smul.addr %s635, 8
        %s637 = scalar_lea.vmem %s0, %s636
        %p638 = pneg %p59
        %p639 = pneg %p56
        %p640 = scmp.lt.s32.totalorder %s38, 1
        %s641 = scalar_select %p640, %s38, 1
        %s642 = smul.addr %s641, 2
        %s643 = smul.addr %s642, 8
        %s644 = scalar_lea.vmem %s1, %s643
        %p645 = pneg %p85
        %p646 = pneg %p82
        %p647 = pneg %p106
        %p648 = pneg %p103
        %p649 = pneg %p127
        %p650 = pneg %p124
        %p651 = pneg %p148
        %p652 = pneg %p145
        %p653 = pneg %p169
        %p654 = pneg %p166
        %p655 = pneg %p190
        %p656 = pneg %p187
        %p657 = pneg %p211
        %p658 = pneg %p208
        %p659 = pneg %p232
        %p660 = pneg %p229
        %p661 = pneg %p253
        %p662 = pneg %p250
        %p663 = pneg %p274
        %p664 = pneg %p271
        %p665 = pneg %p295
        %p666 = pneg %p292
        %p667 = pneg %p316
        %p668 = pneg %p313
        %p669 = pneg %p337
        %p670 = pneg %p334
        %p671 = pneg %p358
        %p672 = pneg %p355
        %p673 = pneg %p379
        %p674 = pneg %p376
        %p675 = pneg %p400
        %p676 = pneg %p397
        %p677 = pneg %p421
        %p678 = pneg %p418
        %p679 = pneg %p442
        %p680 = pneg %p439
        %p681 = pneg %p463
        %p682 = pneg %p460
        %p683 = pneg %p484
        %p684 = pneg %p481
        %p685 = pneg %p505
        %p686 = pneg %p502
        %p687 = pneg %p531
        %p688 = pneg %p528
        %s689 = sand.u32 %s518, 1
        %s690 = scalar_lea.sflag [#allocation4], %s689
        %s691 = sand.u32 %s518, 1
        %s692 = scalar_lea.vmem [#allocation3], %s691
        %p693 = scmp.lt.s32.totalorder %s38, 1
        %s694 = scalar_select %p693, %s38, 1
        %s695 = smul.addr %s694, 2
        %s696 = smul.addr %s695, 8
        %s697 = scalar_lea.vmem %s0, %s696
        %p698 = scmp.lt.s32.totalorder %s38, 1
        %s699 = scalar_select %p698, %s38, 1
        %s700 = smul.addr %s699, 2
        %s701 = smul.addr %s700, 8
        %s702 = scalar_lea.vmem %s1, %s701
        %v703 = vld [vmem:[%s697] sm:$0xff]
        %v704 = vld [vmem:[%s697 + $0x8] sm:$0xff]
        %v705 = vld [vmem:[%s702] sm:$0xff]
        %v706 = vld [vmem:[%s702 + $0x8] sm:$0xff]
        %708 = vset.pattern.permute.xlu0 0
        %709 = vperm.xlu0 %708, %v705
        %v710 = vpop.permute.xlu0 %709
        %713 = vset.pattern.permute.xlu0 0
        %714 = vperm.xlu0 %713, %v706
        %v715 = vpop.permute.xlu0 %714
        %v717 = vmul.f32 %v703, %v710
        %v718 = vmul.f32 %v704, %v715
        %v719 = vld [vmem:[%s2] sm:$0xff]
        %v720 = vld [vmem:[%s2 + $0x8] sm:$0xff]
        %v721 = vld [vmem:[%s2 + $0x10] sm:$0xff]
        %v722 = vld [vmem:[%s2 + $0x18] sm:$0xff]
        %v723 = vld [vmem:[%s2 + $0x20] sm:$0xff]
        %v724 = vld [vmem:[%s2 + $0x28] sm:$0xff]
        %v725 = vld [vmem:[%s3] sm:$0x1]
        %vm728 = vcmask 1040384
        %v729 = vrot.slane %v717, 7
        %v730 = vrot.slane %v718, 7
        %v731 = vsel %vm728, %v729, %v730
        %v735 = vsel %vm728, 0.0, %v729
        %v736 = vsel %vm728, %v730, 0.0
        %vm739 = vcmask 1046528
        %v740 = vrot.slane %v735, 1
        %v741 = vrot.slane %v731, 1
        %v742 = vsel %vm739, %v740, %v741
        %v743 = vrot.slane %v736, 1
        %v744 = vsel %vm739, %v741, %v743
        %745 = vrot.lane.b32.xlu0 %v742, 16
        %v746 = vpop.permute.xlu0 %745
        %747 = vrot.lane.b32.xlu0 %v744, 16
        %v748 = vpop.permute.xlu0 %747
        %vm751 = vcmask 1045504
        %v752 = vrot.slane %v735, 2
        %v753 = vrot.slane %v731, 2
        %v754 = vsel %vm751, %v752, %v753
        %v755 = vrot.slane %v736, 2
        %v756 = vsel %vm751, %v753, %v755
        %757 = vrot.lane.b32.xlu0 %v754, 32
        %v758 = vpop.permute.xlu0 %757
        %759 = vrot.lane.b32.xlu0 %v756, 32
        %v760 = vpop.permute.xlu0 %759
        %vm763 = vcmask 130048
        %v764 = vsel %vm763, %v735, %v746
        %v765 = vsel %vm763, %v731, %v748
        %vm766 = vcmask 261120
        %v767 = vsel %vm766, %v764, %v758
        %v768 = vsel %vm766, %v765, %v760
        %v770 = vperm.slane %v725, 0
        %vm772 = vcmask 392192
        %v774 = vsel %vm772, %v767, 0
        %v777 = vsel %vm772, %v768, 0
        %779 = vmatpush.msra.mxu0 0.0
        %780 = vmatpush.msra.mxu0 0.0
        %781 = vmatpush.msra.mxu0 0.0
        %782 = vmatpush.msra.mxu0 0.0
        %783 = vmatpush.msra.mxu0 0.0
        %784 = vmatpush.msra.mxu0 0.0
        %785 = vmatpush.msra.mxu0 0.0
        %786 = vmatpush.msra.mxu0 0.0
        %787 = vmatpush.msra.mxu0 0.0
        %788 = vmatpush.msra.mxu0 0.0
        %789 = vmatpush.msra.mxu0 %v724
        %790 = vmatpush.msra.mxu0 %v723
        %791 = vmatpush.msra.mxu0 %v722
        %792 = vmatpush.msra.mxu0 %v721
        %793 = vmatpush.msra.mxu0 %v720
        %794 = vmatpush.msra.mxu0 %v719
        %795 = vmatmul.f32.gmra.mxu0 %v774
        %v796 = vpop.f32.mrf.mxu0
        %v797 = vadd.f32 %v770, %v796
        %798 = vmatmul.f32.gmra.mxu0 %v777
        %v799 = vpop.f32.mrf.mxu0
        %v800 = vadd.f32 %v770, %v799
        %801 = vdwg.mxu0
        %v802 = vmax.f32 %v797, 0.0
        %v803 = vmax.f32 %v800, 0.0
        %v804 = vld [vmem:[%s4] sm:$0x1]
        %v805 = vld [vmem:[%s5] sm:$0x1]
        %v806 = vsel %vm766, %v802, 0.0
        %807 = vadd.xlane.f32.xlu0 %v806
        %v808 = vpop.xlane.xlu0 %807
        %v809 = vsel %vm766, %v803, 0.0
        %810 = vadd.xlane.f32.xlu0 %v809
        %v811 = vpop.xlane.xlu0 %810
        %v812 = vrcp.pop 32.0
        %v813 = vmul.f32 32.0, %v812
        %v814 = vsub.f32 1.0, %v813
        %v815 = vmul.f32 %v812, %v814
        %v816 = vadd.f32 %v812, %v815
        %vm817 = vweird.f32 %v812
        %v818 = vsel %vm817, %v812, %v816
        %v819 = vmul.f32 %v808, %v818
        %v820 = vmul.f32 %v811, %v818
        %v821 = vsub.f32 %v802, %v819
        %v822 = vsub.f32 %v803, %v820
        %v823 = vmul.f32 %v821, %v821
        %v824 = vmul.f32 %v822, %v822
        %v825 = vsel %vm766, %v823, 0.0
        %826 = vadd.xlane.f32.xlu0 %v825
        %v827 = vpop.xlane.xlu0 %826
        %v828 = vsel %vm766, %v824, 0.0
        %829 = vadd.xlane.f32.xlu0 %v828
        %v830 = vpop.xlane.xlu0 %829
        %v831 = vmul.f32 %v827, %v818
        %v832 = vmul.f32 %v830, %v818
        %v833 = vadd.f32 %v831, 1e-05
        %v834 = vadd.f32 %v832, 1e-05
        %v835 = vrsqrt.pop %v833
        %v836 = vmul.f32 %v835, %v833
        %v837 = vmul.f32 %v836, %v835
        %v838 = vmul.f32 0.5, %v837
        %v839 = vsub.f32 1.5, %v838
        %v840 = vmul.f32 %v835, %v839
        %vm841 = vweird.f32 %v833
        %vm842 = vweird.f32 %v835
        %vm843 = vmor %vm841, %vm842
        %v844 = vsel %vm843, %v835, %v840
        %v845 = vrsqrt.pop %v834
        %v846 = vmul.f32 %v845, %v834
        %v847 = vmul.f32 %v846, %v845
        %v848 = vmul.f32 0.5, %v847
        %v849 = vsub.f32 1.5, %v848
        %v850 = vmul.f32 %v845, %v849
        %vm851 = vweird.f32 %v834
        %vm852 = vweird.f32 %v845
        %vm853 = vmor %vm851, %vm852
        %v854 = vsel %vm853, %v845, %v850
        %v855 = vmul.f32 %v821, %v844
        %v856 = vmul.f32 %v822, %v854
        %v858 = vperm.slane %v804, 0
        %v860 = vmul.f32 %v855, %v858
        %v861 = vmul.f32 %v856, %v858
        %v863 = vperm.slane %v805, 0
        %v865 = vadd.f32 %v860, %v863
        %v866 = vadd.f32 %v861, %v863
        %v867 = vmul.f32 %v865, %v710
        %v868 = vmul.f32 %v866, %v715
        %v869 = vld [vmem:[%s6] sm:$0xff]
        %v870 = vld [vmem:[%s6 + $0x8] sm:$0xff]
        %v871 = vld [vmem:[%s6 + $0x10] sm:$0xff]
        %v872 = vld [vmem:[%s6 + $0x18] sm:$0xff]
        %v873 = vld [vmem:[%s6 + $0x20] sm:$0xff]
        %v874 = vld [vmem:[%s6 + $0x28] sm:$0xff]
        %v875 = vld [vmem:[%s6 + $0x30] sm:$0xff]
        %v876 = vld [vmem:[%s6 + $0x38] sm:$0xff]
        %v877 = vld [vmem:[%s6 + $0x40] sm:$0xff]
        %v878 = vld [vmem:[%s6 + $0x48] sm:$0xff]
        %v879 = vld [vmem:[%s6 + $0x50] sm:$0xff]
        %v880 = vld [vmem:[%s6 + $0x58] sm:$0xff]
        %v881 = vld [vmem:[%s7] sm:$0x1]
        %v884 = vrot.slane %v867, 7
        %v885 = vrot.slane %v868, 7
        %v886 = vsel %vm728, %v884, %v885
        %v890 = vsel %vm728, 0.0, %v884
        %v891 = vsel %vm728, %v885, 0.0
        %v894 = vrot.slane %v890, 1
        %v895 = vrot.slane %v886, 1
        %v896 = vsel %vm739, %v894, %v895
        %v897 = vrot.slane %v891, 1
        %v898 = vsel %vm739, %v895, %v897
        %899 = vrot.lane.b32.xlu0 %v896, 32
        %v900 = vpop.permute.xlu0 %899
        %901 = vrot.lane.b32.xlu0 %v898, 32
        %v902 = vpop.permute.xlu0 %901
        %v905 = vrot.slane %v890, 2
        %v906 = vrot.slane %v886, 2
        %v907 = vsel %vm751, %v905, %v906
        %v908 = vrot.slane %v891, 2
        %v909 = vsel %vm751, %v906, %v908
        %910 = vrot.lane.b32.xlu0 %v907, 64
        %v911 = vpop.permute.xlu0 %910
        %912 = vrot.lane.b32.xlu0 %v909, 64
        %v913 = vpop.permute.xlu0 %912
        %v916 = vsel %vm766, %v890, %v900
        %v917 = vsel %vm766, %v886, %v902
        %vm918 = vcmask 523264
        %v919 = vsel %vm918, %v916, %v911
        %v920 = vsel %vm918, %v917, %v913
        %v922 = vperm.slane %v881, 0
        %vm924 = vcmask 785408
        %v926 = vsel %vm924, %v919, 0
        %v929 = vsel %vm924, %v920, 0
        %931 = vmatpush.msra.mxu0 0.0
        %932 = vmatpush.msra.mxu0 0.0
        %933 = vmatpush.msra.mxu0 0.0
        %934 = vmatpush.msra.mxu0 0.0
        %935 = vmatpush.msra.mxu0 %v880
        %936 = vmatpush.msra.mxu0 %v879
        %937 = vmatpush.msra.mxu0 %v878
        %938 = vmatpush.msra.mxu0 %v877
        %939 = vmatpush.msra.mxu0 %v876
        %940 = vmatpush.msra.mxu0 %v875
        %941 = vmatpush.msra.mxu0 %v874
        %942 = vmatpush.msra.mxu0 %v873
        %943 = vmatpush.msra.mxu0 %v872
        %944 = vmatpush.msra.mxu0 %v871
        %945 = vmatpush.msra.mxu0 %v870
        %946 = vmatpush.msra.mxu0 %v869
        %947 = vmatmul.f32.gmra.mxu0 %v926
        %v948 = vpop.f32.mrf.mxu0
        %v949 = vadd.f32 %v922, %v948
        %950 = vmatmul.f32.gmra.mxu0 %v929
        %v951 = vpop.f32.mrf.mxu0
        %v952 = vadd.f32 %v922, %v951
        %953 = vdwg.mxu0
        %v954 = vmax.f32 %v949, 0.0
        %v955 = vmax.f32 %v952, 0.0
        %v956 = vld [vmem:[%s8] sm:$0x1]
        %v957 = vld [vmem:[%s9] sm:$0x1]
        %v958 = vsel %vm766, %v954, 0.0
        %959 = vadd.xlane.f32.xlu0 %v958
        %v960 = vpop.xlane.xlu0 %959
        %v961 = vsel %vm766, %v955, 0.0
        %962 = vadd.xlane.f32.xlu0 %v961
        %v963 = vpop.xlane.xlu0 %962
        %v964 = vmul.f32 %v960, %v818
        %v965 = vmul.f32 %v963, %v818
        %v966 = vsub.f32 %v954, %v964
        %v967 = vsub.f32 %v955, %v965
        %v968 = vmul.f32 %v966, %v966
        %v969 = vmul.f32 %v967, %v967
        %v970 = vsel %vm766, %v968, 0.0
        %971 = vadd.xlane.f32.xlu0 %v970
        %v972 = vpop.xlane.xlu0 %971
        %v973 = vsel %vm766, %v969, 0.0
        %974 = vadd.xlane.f32.xlu0 %v973
        %v975 = vpop.xlane.xlu0 %974
        %v976 = vmul.f32 %v972, %v818
        %v977 = vmul.f32 %v975, %v818
        %v978 = vadd.f32 %v976, 1e-05
        %v979 = vadd.f32 %v977, 1e-05
        %v980 = vrsqrt.pop %v978
        %v981 = vmul.f32 %v980, %v978
        %v982 = vmul.f32 %v981, %v980
        %v983 = vmul.f32 0.5, %v982
        %v984 = vsub.f32 1.5, %v983
        %v985 = vmul.f32 %v980, %v984
        %vm986 = vweird.f32 %v978
        %vm987 = vweird.f32 %v980
        %vm988 = vmor %vm986, %vm987
        %v989 = vsel %vm988, %v980, %v985
        %v990 = vrsqrt.pop %v979
        %v991 = vmul.f32 %v990, %v979
        %v992 = vmul.f32 %v991, %v990
        %v993 = vmul.f32 0.5, %v992
        %v994 = vsub.f32 1.5, %v993
        %v995 = vmul.f32 %v990, %v994
        %vm996 = vweird.f32 %v979
        %vm997 = vweird.f32 %v990
        %vm998 = vmor %vm996, %vm997
        %v999 = vsel %vm998, %v990, %v995
        %v1000 = vmul.f32 %v966, %v989
        %v1001 = vmul.f32 %v967, %v999
        %v1003 = vperm.slane %v956, 0
        %v1005 = vmul.f32 %v1000, %v1003
        %v1006 = vmul.f32 %v1001, %v1003
        %v1008 = vperm.slane %v957, 0
        %v1010 = vadd.f32 %v1005, %v1008
        %v1011 = vadd.f32 %v1006, %v1008
        %v1012 = vmul.f32 %v1010, %v710
        %v1013 = vmul.f32 %v1011, %v715
        %v1014 = vld [vmem:[%s10] sm:$0xff]
        %v1015 = vld [vmem:[%s10 + $0x8] sm:$0xff]
        %v1016 = vld [vmem:[%s10 + $0x10] sm:$0xff]
        %v1017 = vld [vmem:[%s10 + $0x18] sm:$0xff]
        %v1018 = vld [vmem:[%s10 + $0x20] sm:$0xff]
        %v1019 = vld [vmem:[%s10 + $0x28] sm:$0xff]
        %v1020 = vld [vmem:[%s10 + $0x30] sm:$0xff]
        %v1021 = vld [vmem:[%s10 + $0x38] sm:$0xff]
        %v1022 = vld [vmem:[%s10 + $0x40] sm:$0xff]
        %v1023 = vld [vmem:[%s10 + $0x48] sm:$0xff]
        %v1024 = vld [vmem:[%s10 + $0x50] sm:$0xff]
        %v1025 = vld [vmem:[%s10 + $0x58] sm:$0xff]
        %v1026 = vld [vmem:[%s11] sm:$0x1]
        %v1029 = vrot.slane %v1012, 7
        %v1030 = vrot.slane %v1013, 7
        %v1031 = vsel %vm728, %v1029, %v1030
        %v1035 = vsel %vm728, 0.0, %v1029
        %v1036 = vsel %vm728, %v1030, 0.0
        %v1039 = vrot.slane %v1035, 1
        %v1040 = vrot.slane %v1031, 1
        %v1041 = vsel %vm739, %v1039, %v1040
        %v1042 = vrot.slane %v1036, 1
        %v1043 = vsel %vm739, %v1040, %v1042
        %1044 = vrot.lane.b32.xlu0 %v1041, 32
        %v1045 = vpop.permute.xlu0 %1044
        %1046 = vrot.lane.b32.xlu0 %v1043, 32
        %v1047 = vpop.permute.xlu0 %1046
        %v1050 = vrot.slane %v1035, 2
        %v1051 = vrot.slane %v1031, 2
        %v1052 = vsel %vm751, %v1050, %v1051
        %v1053 = vrot.slane %v1036, 2
        %v1054 = vsel %vm751, %v1051, %v1053
        %1055 = vrot.lane.b32.xlu0 %v1052, 64
        %v1056 = vpop.permute.xlu0 %1055
        %1057 = vrot.lane.b32.xlu0 %v1054, 64
        %v1058 = vpop.permute.xlu0 %1057
        %v1061 = vsel %vm766, %v1035, %v1045
        %v1062 = vsel %vm766, %v1031, %v1047
        %v1063 = vsel %vm918, %v1061, %v1056
        %v1064 = vsel %vm918, %v1062, %v1058
        %v1066 = vperm.slane %v1026, 0
        %v1069 = vsel %vm924, %v1063, 0
        %v1072 = vsel %vm924, %v1064, 0
        %1074 = vmatpush.msra.mxu0 0.0
        %1075 = vmatpush.msra.mxu0 0.0
        %1076 = vmatpush.msra.mxu0 0.0
        %1077 = vmatpush.msra.mxu0 0.0
        %1078 = vmatpush.msra.mxu0 %v1025
        %1079 = vmatpush.msra.mxu0 %v1024
        %1080 = vmatpush.msra.mxu0 %v1023
        %1081 = vmatpush.msra.mxu0 %v1022
        %1082 = vmatpush.msra.mxu0 %v1021
        %1083 = vmatpush.msra.mxu0 %v1020
        %1084 = vmatpush.msra.mxu0 %v1019
        %1085 = vmatpush.msra.mxu0 %v1018
        %1086 = vmatpush.msra.mxu0 %v1017
        %1087 = vmatpush.msra.mxu0 %v1016
        %1088 = vmatpush.msra.mxu0 %v1015
        %1089 = vmatpush.msra.mxu0 %v1014
        %1090 = vmatmul.f32.gmra.mxu0 %v1069
        %v1091 = vpop.f32.mrf.mxu0
        %v1092 = vadd.f32 %v1066, %v1091
        %1093 = vmatmul.f32.gmra.mxu0 %v1072
        %v1094 = vpop.f32.mrf.mxu0
        %v1095 = vadd.f32 %v1066, %v1094
        %1096 = vdwg.mxu0
        %v1097 = vmul.f32 %v705, %v710
        %v1098 = vmul.f32 %v706, %v715
        %vm1099 = vcmask 7168
        %v1100 = vsel %vm1099, %v705, %v1097
        %v1101 = vsel %vm1099, %v706, %v1098
        %v1104 = vrot.slane %v1100, 7
        %v1105 = vrot.slane %v1101, 7
        %v1106 = vsel %vm728, %v1104, %v1105
        %v1109 = vsel %vm728, 0.0, %v1104
        %v1110 = vsel %vm728, %v1105, 0.0
        %v1111 = vld [vmem:[%s15] sm:$0x1]
        %1113 = vset.pattern.permute.xlu0 0
        %1114 = vperm.xlu0 %1113, %v1109
        %v1115 = vpop.permute.xlu0 %1114
        %1117 = vset.pattern.permute.xlu0 0
        %1118 = vperm.xlu0 %1117, %v1106
        %v1119 = vpop.permute.xlu0 %1118
        %v1121 = vperm.slane %v1111, 0
        %v1122 = vmul.f32 %v1115, %v1121
        %v1123 = vmul.f32 %v1119, %v1121
        %v1124 = vadd.f32 %v1092, %v1122
        %v1125 = vadd.f32 %v1095, %v1123
        %v1126 = vld [vmem:[%s15 + $0x1] sm:$0x1]
        %1128 = vset.pattern.permute.xlu0 0
        %1129 = vperm.xlu0 %1128, %v1110
        %v1130 = vpop.permute.xlu0 %1129
        %v1132 = vperm.slane %v1126, 0
        %v1133 = vmul.f32 %v1115, %v1132
        %v1134 = vmul.f32 %v1119, %v1132
        %v1135 = vmul.f32 %v1130, %v1132
        %v1139 = vrot.slane %v1133, 1
        %v1140 = vrot.slane %v1134, 1
        %v1141 = vsel %vm739, %v1139, %v1140
        %v1142 = vrot.slane %v1135, 1
        %v1143 = vsel %vm739, %v1140, %v1142
        %v1146 = vadd.f32 %v1124, %v1141
        %v1147 = vadd.f32 %v1125, %v1143
        %v1148 = vld [vmem:[%s15 + $0x2] sm:$0x1]
        %v1149 = vperm.slane %v1148, 0
        %v1150 = vmul.f32 %v1115, %v1149
        %v1151 = vmul.f32 %v1119, %v1149
        %v1152 = vmul.f32 %v1130, %v1149
        %v1156 = vrot.slane %v1150, 2
        %v1157 = vrot.slane %v1151, 2
        %v1158 = vsel %vm751, %v1156, %v1157
        %v1159 = vrot.slane %v1152, 2
        %v1160 = vsel %vm751, %v1157, %v1159
        %v1163 = vadd.f32 %v1146, %v1158
        %v1164 = vadd.f32 %v1147, %v1160
        %v1165 = vld [vmem:[%s14] sm:$0x1]
        %1166 = vset.pattern.permute.xlu0 1
        %1167 = vperm.xlu0 %1166, %v1109
        %v1168 = vpop.permute.xlu0 %1167
        %1170 = vset.pattern.permute.xlu0 1
        %1171 = vperm.xlu0 %1170, %v1106
        %v1172 = vpop.permute.xlu0 %1171
        %v1174 = vperm.slane %v1165, 0
        %v1175 = vmul.f32 %v1168, %v1174
        %v1176 = vmul.f32 %v1172, %v1174
        %v1177 = vadd.f32 %v1175, 0.0
        %v1178 = vadd.f32 %v1176, 0.0
        %1179 = vset.pattern.permute.xlu0 2
        %1180 = vperm.xlu0 %1179, %v1109
        %v1181 = vpop.permute.xlu0 %1180
        %1183 = vset.pattern.permute.xlu0 2
        %1184 = vperm.xlu0 %1183, %v1106
        %v1185 = vpop.permute.xlu0 %1184
        %v1187 = vmul.f32 %v1181, %v1174
        %v1188 = vmul.f32 %v1185, %v1174
        %v1189 = vadd.f32 %v1187, 0.0
        %v1190 = vadd.f32 %v1188, 0.0
        %v1191 = vld [vmem:[%s14 + $0x1] sm:$0x1]
        %1192 = vset.pattern.permute.xlu0 1
        %1193 = vperm.xlu0 %1192, %v1110
        %v1194 = vpop.permute.xlu0 %1193
        %v1196 = vperm.slane %v1191, 0
        %v1197 = vmul.f32 %v1168, %v1196
        %v1198 = vmul.f32 %v1172, %v1196
        %v1199 = vmul.f32 %v1194, %v1196
        %v1203 = vrot.slane %v1197, 1
        %v1204 = vrot.slane %v1198, 1
        %v1205 = vsel %vm739, %v1203, %v1204
        %v1206 = vrot.slane %v1199, 1
        %v1207 = vsel %vm739, %v1204, %v1206
        %v1210 = vadd.f32 %v1177, %v1205
        %v1211 = vadd.f32 %v1178, %v1207
        %1212 = vset.pattern.permute.xlu0 2
        %1213 = vperm.xlu0 %1212, %v1110
        %v1214 = vpop.permute.xlu0 %1213
        %v1216 = vmul.f32 %v1181, %v1196
        %v1217 = vmul.f32 %v1185, %v1196
        %v1218 = vmul.f32 %v1214, %v1196
        %v1222 = vrot.slane %v1216, 1
        %v1223 = vrot.slane %v1217, 1
        %v1224 = vsel %vm739, %v1222, %v1223
        %v1225 = vrot.slane %v1218, 1
        %v1226 = vsel %vm739, %v1223, %v1225
        %v1229 = vadd.f32 %v1189, %v1224
        %v1230 = vadd.f32 %v1190, %v1226
        %v1231 = vld [vmem:[%s14 + $0x2] sm:$0x1]
        %v1232 = vperm.slane %v1231, 0
        %v1233 = vmul.f32 %v1168, %v1232
        %v1234 = vmul.f32 %v1172, %v1232
        %v1235 = vmul.f32 %v1194, %v1232
        %v1239 = vrot.slane %v1233, 2
        %v1240 = vrot.slane %v1234, 2
        %v1241 = vsel %vm751, %v1239, %v1240
        %v1242 = vrot.slane %v1235, 2
        %v1243 = vsel %vm751, %v1240, %v1242
        %v1246 = vadd.f32 %v1210, %v1241
        %v1247 = vadd.f32 %v1211, %v1243
        %v1248 = vmul.f32 %v1181, %v1232
        %v1249 = vmul.f32 %v1185, %v1232
        %v1250 = vmul.f32 %v1214, %v1232
        %v1254 = vrot.slane %v1248, 2
        %v1255 = vrot.slane %v1249, 2
        %v1256 = vsel %vm751, %v1254, %v1255
        %v1257 = vrot.slane %v1250, 2
        %v1258 = vsel %vm751, %v1255, %v1257
        %v1261 = vadd.f32 %v1229, %v1256
        %v1262 = vadd.f32 %v1230, %v1258
        %v1263 = vadd.f32 %v1163, %v1246
        %v1264 = vadd.f32 %v1164, %v1247
        %v1265 = vadd.f32 %v1163, %v1261
        %v1266 = vadd.f32 %v1164, %v1262
        %v1267 = vmax.f32 %v1263, 0.0
        %v1268 = vmax.f32 %v1264, 0.0
        %v1269 = vmax.f32 %v1265, 0.0
        %v1270 = vmax.f32 %v1266, 0.0
        %v1271 = vld [vmem:[%s12] sm:$0x1]
        %v1272 = vld [vmem:[%s13] sm:$0x1]
        %v1273 = vsel %vm766, %v1267, 0.0
        %1274 = vadd.xlane.f32.xlu0 %v1273
        %v1275 = vpop.xlane.xlu0 %1274
        %v1276 = vsel %vm766, %v1268, 0.0
        %1277 = vadd.xlane.f32.xlu0 %v1276
        %v1278 = vpop.xlane.xlu0 %1277
        %v1279 = vsel %vm766, %v1269, 0.0
        %1280 = vadd.xlane.f32.xlu0 %v1279
        %v1281 = vpop.xlane.xlu0 %1280
        %v1282 = vsel %vm766, %v1270, 0.0
        %1283 = vadd.xlane.f32.xlu0 %v1282
        %v1284 = vpop.xlane.xlu0 %1283
        %v1285 = vmul.f32 %v1275, %v818
        %v1286 = vmul.f32 %v1278, %v818
        %v1287 = vmul.f32 %v1281, %v818
        %v1288 = vmul.f32 %v1284, %v818
        %v1289 = vsub.f32 %v1267, %v1285
        %v1290 = vsub.f32 %v1268, %v1286
        %v1291 = vsub.f32 %v1269, %v1287
        %v1292 = vsub.f32 %v1270, %v1288
        %v1293 = vmul.f32 %v1289, %v1289
        %v1294 = vmul.f32 %v1290, %v1290
        %v1295 = vmul.f32 %v1291, %v1291
        %v1296 = vmul.f32 %v1292, %v1292
        %v1297 = vsel %vm766, %v1293, 0.0
        %1298 = vadd.xlane.f32.xlu0 %v1297
        %v1299 = vpop.xlane.xlu0 %1298
        %v1300 = vsel %vm766, %v1294, 0.0
        %1301 = vadd.xlane.f32.xlu0 %v1300
        %v1302 = vpop.xlane.xlu0 %1301
        %v1303 = vsel %vm766, %v1295, 0.0
        %1304 = vadd.xlane.f32.xlu0 %v1303
        %v1305 = vpop.xlane.xlu0 %1304
        %v1306 = vsel %vm766, %v1296, 0.0
        %1307 = vadd.xlane.f32.xlu0 %v1306
        %v1308 = vpop.xlane.xlu0 %1307
        %v1309 = vmul.f32 %v1299, %v818
        %v1310 = vmul.f32 %v1302, %v818
        %v1311 = vmul.f32 %v1305, %v818
        %v1312 = vmul.f32 %v1308, %v818
        %v1313 = vadd.f32 %v1309, 1e-05
        %v1314 = vadd.f32 %v1310, 1e-05
        %v1315 = vadd.f32 %v1311, 1e-05
        %v1316 = vadd.f32 %v1312, 1e-05
        %v1317 = vrsqrt.pop %v1313
        %v1318 = vmul.f32 %v1317, %v1313
        %v1319 = vmul.f32 %v1318, %v1317
        %v1320 = vmul.f32 0.5, %v1319
        %v1321 = vsub.f32 1.5, %v1320
        %v1322 = vmul.f32 %v1317, %v1321
        %vm1323 = vweird.f32 %v1313
        %vm1324 = vweird.f32 %v1317
        %vm1325 = vmor %vm1323, %vm1324
        %v1326 = vsel %vm1325, %v1317, %v1322
        %v1327 = vrsqrt.pop %v1314
        %v1328 = vmul.f32 %v1327, %v1314
        %v1329 = vmul.f32 %v1328, %v1327
        %v1330 = vmul.f32 0.5, %v1329
        %v1331 = vsub.f32 1.5, %v1330
        %v1332 = vmul.f32 %v1327, %v1331
        %vm1333 = vweird.f32 %v1314
        %vm1334 = vweird.f32 %v1327
        %vm1335 = vmor %vm1333, %vm1334
        %v1336 = vsel %vm1335, %v1327, %v1332
        %v1337 = vrsqrt.pop %v1315
        %v1338 = vmul.f32 %v1337, %v1315
        %v1339 = vmul.f32 %v1338, %v1337
        %v1340 = vmul.f32 0.5, %v1339
        %v1341 = vsub.f32 1.5, %v1340
        %v1342 = vmul.f32 %v1337, %v1341
        %vm1343 = vweird.f32 %v1315
        %vm1344 = vweird.f32 %v1337
        %vm1345 = vmor %vm1343, %vm1344
        %v1346 = vsel %vm1345, %v1337, %v1342
        %v1347 = vrsqrt.pop %v1316
        %v1348 = vmul.f32 %v1347, %v1316
        %v1349 = vmul.f32 %v1348, %v1347
        %v1350 = vmul.f32 0.5, %v1349
        %v1351 = vsub.f32 1.5, %v1350
        %v1352 = vmul.f32 %v1347, %v1351
        %vm1353 = vweird.f32 %v1316
        %vm1354 = vweird.f32 %v1347
        %vm1355 = vmor %vm1353, %vm1354
        %v1356 = vsel %vm1355, %v1347, %v1352
        %v1357 = vmul.f32 %v1289, %v1326
        %v1358 = vmul.f32 %v1290, %v1336
        %v1359 = vmul.f32 %v1291, %v1346
        %v1360 = vmul.f32 %v1292, %v1356
        %v1362 = vperm.slane %v1271, 0
        %v1364 = vmul.f32 %v1357, %v1362
        %v1365 = vmul.f32 %v1358, %v1362
        %v1366 = vmul.f32 %v1359, %v1362
        %v1367 = vmul.f32 %v1360, %v1362
        %v1369 = vperm.slane %v1272, 0
        %v1371 = vadd.f32 %v1364, %v1369
        %v1372 = vadd.f32 %v1365, %v1369
        %v1373 = vadd.f32 %v1366, %v1369
        %v1374 = vadd.f32 %v1367, %v1369
        %v1375 = vmul.f32 %v1371, %v710
        %v1376 = vmul.f32 %v1372, %v715
        %v1377 = vmul.f32 %v1373, %v710
        %v1378 = vmul.f32 %v1374, %v715
        %v1381 = vrot.slane %v1375, 7
        %v1382 = vrot.slane %v1376, 7
        %v1383 = vsel %vm728, %v1381, %v1382
        %v1387 = vsel %vm728, 0.0, %v1381
        %v1388 = vsel %vm728, %v1382, 0.0
        %v1391 = vrot.slane %v1387, 1
        %v1392 = vrot.slane %v1383, 1
        %v1393 = vsel %vm739, %v1391, %v1392
        %v1394 = vrot.slane %v1388, 1
        %v1395 = vsel %vm739, %v1392, %v1394
        %1396 = vrot.lane.b32.xlu0 %v1393, 32
        %v1397 = vpop.permute.xlu0 %1396
        %1398 = vrot.lane.b32.xlu0 %v1395, 32
        %v1399 = vpop.permute.xlu0 %1398
        %v1402 = vrot.slane %v1387, 2
        %v1403 = vrot.slane %v1383, 2
        %v1404 = vsel %vm751, %v1402, %v1403
        %v1405 = vrot.slane %v1388, 2
        %v1406 = vsel %vm751, %v1403, %v1405
        %1407 = vrot.lane.b32.xlu0 %v1404, 64
        %v1408 = vpop.permute.xlu0 %1407
        %1409 = vrot.lane.b32.xlu0 %v1406, 64
        %v1410 = vpop.permute.xlu0 %1409
        %v1413 = vsel %vm766, %v1387, %v1397
        %v1414 = vsel %vm766, %v1383, %v1399
        %v1415 = vsel %vm918, %v1413, %v1408
        %v1416 = vsel %vm918, %v1414, %v1410
        %v1419 = vrot.slane %v1377, 7
        %v1420 = vrot.slane %v1378, 7
        %v1421 = vsel %vm728, %v1419, %v1420
        %v1425 = vsel %vm728, 0.0, %v1419
        %v1426 = vsel %vm728, %v1420, 0.0
        %v1429 = vrot.slane %v1425, 1
        %v1430 = vrot.slane %v1421, 1
        %v1431 = vsel %vm739, %v1429, %v1430
        %v1432 = vrot.slane %v1426, 1
        %v1433 = vsel %vm739, %v1430, %v1432
        %1434 = vrot.lane.b32.xlu0 %v1431, 32
        %v1435 = vpop.permute.xlu0 %1434
        %1436 = vrot.lane.b32.xlu0 %v1433, 32
        %v1437 = vpop.permute.xlu0 %1436
        %v1440 = vrot.slane %v1425, 2
        %v1441 = vrot.slane %v1421, 2
        %v1442 = vsel %vm751, %v1440, %v1441
        %v1443 = vrot.slane %v1426, 2
        %v1444 = vsel %vm751, %v1441, %v1443
        %1445 = vrot.lane.b32.xlu0 %v1442, 64
        %v1446 = vpop.permute.xlu0 %1445
        %1447 = vrot.lane.b32.xlu0 %v1444, 64
        %v1448 = vpop.permute.xlu0 %1447
        %v1451 = vsel %vm766, %v1425, %v1435
        %v1452 = vsel %vm766, %v1421, %v1437
        %v1453 = vsel %vm918, %v1451, %v1446
        %v1454 = vsel %vm918, %v1452, %v1448
        %v1455 = vld [vmem:[%s16] sm:$0xff]
        %v1456 = vld [vmem:[%s16 + $0x8] sm:$0xff]
        %v1457 = vld [vmem:[%s16 + $0x10] sm:$0xff]
        %v1458 = vld [vmem:[%s16 + $0x18] sm:$0xff]
        %v1459 = vld [vmem:[%s16 + $0x20] sm:$0xff]
        %v1460 = vld [vmem:[%s16 + $0x28] sm:$0xff]
        %v1461 = vld [vmem:[%s16 + $0x30] sm:$0xff]
        %v1462 = vld [vmem:[%s16 + $0x38] sm:$0xff]
        %v1463 = vld [vmem:[%s16 + $0x40] sm:$0xff]
        %v1464 = vld [vmem:[%s16 + $0x48] sm:$0xff]
        %v1465 = vld [vmem:[%s16 + $0x50] sm:$0xff]
        %v1466 = vld [vmem:[%s16 + $0x58] sm:$0xff]
        %v1467 = vld [vmem:[%s17] sm:$0x1]
        %v1469 = vperm.slane %v1467, 0
        %v1472 = vsel %vm924, %v1415, 0
        %v1475 = vsel %vm924, %v1416, 0
        %v1478 = vsel %vm924, %v1453, 0
        %v1481 = vsel %vm924, %v1454, 0
        %1483 = vmatpush.msra.mxu0 0.0
        %1484 = vmatpush.msra.mxu0 0.0
        %1485 = vmatpush.msra.mxu0 0.0
        %1486 = vmatpush.msra.mxu0 0.0
        %1487 = vmatpush.msra.mxu0 %v1466
        %1488 = vmatpush.msra.mxu0 %v1465
        %1489 = vmatpush.msra.mxu0 %v1464
        %1490 = vmatpush.msra.mxu0 %v1463
        %1491 = vmatpush.msra.mxu0 %v1462
        %1492 = vmatpush.msra.mxu0 %v1461
        %1493 = vmatpush.msra.mxu0 %v1460
        %1494 = vmatpush.msra.mxu0 %v1459
        %1495 = vmatpush.msra.mxu0 %v1458
        %1496 = vmatpush.msra.mxu0 %v1457
        %1497 = vmatpush.msra.mxu0 %v1456
        %1498 = vmatpush.msra.mxu0 %v1455
        %1499 = vmatmul.f32.gmra.mxu0 %v1472
        %v1500 = vpop.f32.mrf.mxu0
        %v1501 = vadd.f32 %v1469, %v1500
        %1502 = vmatmul.f32.gmra.mxu0 %v1475
        %v1503 = vpop.f32.mrf.mxu0
        %v1504 = vadd.f32 %v1469, %v1503
        %1505 = vmatmul.f32.gmra.mxu0 %v1478
        %v1506 = vpop.f32.mrf.mxu0
        %v1507 = vadd.f32 %v1469, %v1506
        %1508 = vmatmul.f32.gmra.mxu0 %v1481
        %v1509 = vpop.f32.mrf.mxu0
        %v1510 = vadd.f32 %v1469, %v1509
        %1511 = vdwg.mxu0
        %v1512 = vmax.f32 %v1501, 0.0
        %v1513 = vmax.f32 %v1504, 0.0
        %v1514 = vmax.f32 %v1507, 0.0
        %v1515 = vmax.f32 %v1510, 0.0
        %v1516 = vld [vmem:[%s18] sm:$0x1]
        %v1517 = vld [vmem:[%s19] sm:$0x1]
        %v1518 = vsel %vm766, %v1512, 0.0
        %1519 = vadd.xlane.f32.xlu0 %v1518
        %v1520 = vpop.xlane.xlu0 %1519
        %v1521 = vsel %vm766, %v1513, 0.0
        %1522 = vadd.xlane.f32.xlu0 %v1521
        %v1523 = vpop.xlane.xlu0 %1522
        %v1524 = vsel %vm766, %v1514, 0.0
        %1525 = vadd.xlane.f32.xlu0 %v1524
        %v1526 = vpop.xlane.xlu0 %1525
        %v1527 = vsel %vm766, %v1515, 0.0
        %1528 = vadd.xlane.f32.xlu0 %v1527
        %v1529 = vpop.xlane.xlu0 %1528
        %v1530 = vmul.f32 %v1520, %v818
        %v1531 = vmul.f32 %v1523, %v818
        %v1532 = vmul.f32 %v1526, %v818
        %v1533 = vmul.f32 %v1529, %v818
        %v1534 = vsub.f32 %v1512, %v1530
        %v1535 = vsub.f32 %v1513, %v1531
        %v1536 = vsub.f32 %v1514, %v1532
        %v1537 = vsub.f32 %v1515, %v1533
        %v1538 = vmul.f32 %v1534, %v1534
        %v1539 = vmul.f32 %v1535, %v1535
        %v1540 = vmul.f32 %v1536, %v1536
        %v1541 = vmul.f32 %v1537, %v1537
        %v1542 = vsel %vm766, %v1538, 0.0
        %1543 = vadd.xlane.f32.xlu0 %v1542
        %v1544 = vpop.xlane.xlu0 %1543
        %v1545 = vsel %vm766, %v1539, 0.0
        %1546 = vadd.xlane.f32.xlu0 %v1545
        %v1547 = vpop.xlane.xlu0 %1546
        %v1548 = vsel %vm766, %v1540, 0.0
        %1549 = vadd.xlane.f32.xlu0 %v1548
        %v1550 = vpop.xlane.xlu0 %1549
        %v1551 = vsel %vm766, %v1541, 0.0
        %1552 = vadd.xlane.f32.xlu0 %v1551
        %v1553 = vpop.xlane.xlu0 %1552
        %v1554 = vmul.f32 %v1544, %v818
        %v1555 = vmul.f32 %v1547, %v818
        %v1556 = vmul.f32 %v1550, %v818
        %v1557 = vmul.f32 %v1553, %v818
        %v1558 = vadd.f32 %v1554, 1e-05
        %v1559 = vadd.f32 %v1555, 1e-05
        %v1560 = vadd.f32 %v1556, 1e-05
        %v1561 = vadd.f32 %v1557, 1e-05
        %v1562 = vrsqrt.pop %v1558
        %v1563 = vmul.f32 %v1562, %v1558
        %v1564 = vmul.f32 %v1563, %v1562
        %v1565 = vmul.f32 0.5, %v1564
        %v1566 = vsub.f32 1.5, %v1565
        %v1567 = vmul.f32 %v1562, %v1566
        %vm1568 = vweird.f32 %v1558
        %vm1569 = vweird.f32 %v1562
        %vm1570 = vmor %vm1568, %vm1569
        %v1571 = vsel %vm1570, %v1562, %v1567
        %v1572 = vrsqrt.pop %v1559
        %v1573 = vmul.f32 %v1572, %v1559
        %v1574 = vmul.f32 %v1573, %v1572
        %v1575 = vmul.f32 0.5, %v1574
        %v1576 = vsub.f32 1.5, %v1575
        %v1577 = vmul.f32 %v1572, %v1576
        %vm1578 = vweird.f32 %v1559
        %vm1579 = vweird.f32 %v1572
        %vm1580 = vmor %vm1578, %vm1579
        %v1581 = vsel %vm1580, %v1572, %v1577
        %v1582 = vrsqrt.pop %v1560
        %v1583 = vmul.f32 %v1582, %v1560
        %v1584 = vmul.f32 %v1583, %v1582
        %v1585 = vmul.f32 0.5, %v1584
        %v1586 = vsub.f32 1.5, %v1585
        %v1587 = vmul.f32 %v1582, %v1586
        %vm1588 = vweird.f32 %v1560
        %vm1589 = vweird.f32 %v1582
        %vm1590 = vmor %vm1588, %vm1589
        %v1591 = vsel %vm1590, %v1582, %v1587
        %v1592 = vrsqrt.pop %v1561
        %v1593 = vmul.f32 %v1592, %v1561
        %v1594 = vmul.f32 %v1593, %v1592
        %v1595 = vmul.f32 0.5, %v1594
        %v1596 = vsub.f32 1.5, %v1595
        %v1597 = vmul.f32 %v1592, %v1596
        %vm1598 = vweird.f32 %v1561
        %vm1599 = vweird.f32 %v1592
        %vm1600 = vmor %vm1598, %vm1599
        %v1601 = vsel %vm1600, %v1592, %v1597
        %v1602 = vmul.f32 %v1534, %v1571
        %v1603 = vmul.f32 %v1535, %v1581
        %v1604 = vmul.f32 %v1536, %v1591
        %v1605 = vmul.f32 %v1537, %v1601
        %v1607 = vperm.slane %v1516, 0
        %v1609 = vmul.f32 %v1602, %v1607
        %v1610 = vmul.f32 %v1603, %v1607
        %v1611 = vmul.f32 %v1604, %v1607
        %v1612 = vmul.f32 %v1605, %v1607
        %v1614 = vperm.slane %v1517, 0
        %v1616 = vadd.f32 %v1609, %v1614
        %v1617 = vadd.f32 %v1610, %v1614
        %v1618 = vadd.f32 %v1611, %v1614
        %v1619 = vadd.f32 %v1612, %v1614
        %v1620 = vmul.f32 %v1616, %v710
        %v1621 = vmul.f32 %v1617, %v715
        %v1622 = vmul.f32 %v1618, %v710
        %v1623 = vmul.f32 %v1619, %v715
        %v1624 = vld [vmem:[%s20] sm:$0x1]
        %v1625 = vld [vmem:[#allocation2] sm:$0x1]
        %1627 = vset.pattern.permute.xlu0 0
        %1628 = vperm.xlu0 %1627, %v1625
        %v1629 = vpop.permute.xlu0 %1628
        %v1631 = vperm.slane %v1629, 0
        %v1633 = vsel %vm766, %v1624, 0
        %v1636 = vsel %vm766, %v1620, 0
        %v1639 = vsel %vm766, %v1621, 0
        %v1642 = vsel %vm766, %v1622, 0
        %v1645 = vsel %vm766, %v1623, 0
        %1647 = vmatpush.xpose.msra.mxu0 0.0
        %1648 = vmatpush.xpose.msra.mxu0 0.0
        %1649 = vmatpush.xpose.msra.mxu0 0.0
        %1650 = vmatpush.xpose.msra.mxu0 0.0
        %1651 = vmatpush.xpose.msra.mxu0 0.0
        %1652 = vmatpush.xpose.msra.mxu0 0.0
        %1653 = vmatpush.xpose.msra.mxu0 0.0
        %1654 = vmatpush.xpose.msra.mxu0 0.0
        %1655 = vmatpush.xpose.msra.mxu0 0.0
        %1656 = vmatpush.xpose.msra.mxu0 0.0
        %1657 = vmatpush.xpose.msra.mxu0 0.0
        %1658 = vmatpush.xpose.msra.mxu0 0.0
        %1659 = vmatpush.xpose.msra.mxu0 %v1645
        %1660 = vmatpush.xpose.msra.mxu0 %v1642
        %1661 = vmatpush.xpose.msra.mxu0 %v1639
        %1662 = vmatpush.xpose.msra.mxu0 %v1636
        %1663 = vmatmul.f32.gmra.mxu0 %v1633
        %v1664 = vpop.f32.mrf.mxu0
        %v1665 = vadd.f32 %v1631, %v1664
        %1666 = vdwg.mxu0
        %v1667 = vxor.u32 %v1665, 2147483648
        %v1668 = vmul.f32 %v1667, 1.442695
        %v1669 = vpow.pop %v1668
        %v1670 = vadd.f32 %v1669, 1.0
        %v1671 = vrcp.pop %v1670
        %v1672 = vmul.f32 %v1670, %v1671
        %v1673 = vsub.f32 1.0, %v1672
        %v1674 = vmul.f32 %v1671, %v1673
        %v1675 = vadd.f32 %v1671, %v1674
        %vm1676 = vweird.f32 %v1670
        %vm1677 = vweird.f32 %v1671
        %vm1678 = vmor %vm1676, %vm1677
        %v1679 = vsel %vm1678, %v1671, %v1675
        %v1680 = vand.u32 2147483647, %v1670
        %vm1681 = vcmp.eq.f32.partialorder %v1680, 8.507059e+37
        %v1682 = vand.u32 %v1670, 2147483648
        %v1683 = vor.u32 1.1754944e-38, %v1682
        %v1684 = vsel %vm1681, %v1683, %v1679
        %v1685 = vmul.f32 1.0, %v1684
        %vm1686 = vcmask 253952
        %1687 = vst.msk [vmem:[%s692] sm:$0x1] %vm1686, %v1685
        %s1688 = sand.u32 %s518, 1
        %s1689 = scalar_lea.sflag [#allocation4], %s1688
        %s1690 = sand.u32 %s518, 1
        %s1691 = scalar_lea.vmem [#allocation3], %s1690
        // Predicated region
        $region109: #{tpu_custom_call.1} parent=107 // pred_check
          %p1692 = pneg %p528
        $region110: #{tpu_custom_call.1} parent=107 // pred_check_branch
          %1694 = sbr.rel (%p1692) target = $region112
        $region111: #{tpu_custom_call.1} parent=107 // pred_region
          %1696 = vsyncadd %s1689, 0
          %s1697 = scalar_lea.hbm %s22, %s38
          %s1699 = sshll.u32 %s1691, 4
          %s1700 = int_to_ptr.vmem [resolvable:$true] %s1699
          %s1701 = sshll.u32 %s1697, 4
          %s1702 = int_to_ptr.hbm [resolvable:$true] %s1701
          %1704 = dma.vmem_to_hbm [thread:$0]  %s1700, 16, %s1702, %s1689
        $region112: #{tpu_custom_call.1} parent=107 // pred_fallthru
          _
      $region108: #{tpu_custom_call.1} parent=5 // pred_fallthru
        _
      %p1705 = scmp.le.s32.totalorder 2, %s33
      // Predicated region
      $region113: #{tpu_custom_call.1} parent=5 // pred_check
        %p1706 = pneg %p1705
      $region114: #{tpu_custom_call.1} parent=5 // pred_check_branch
        %1708 = sbr.rel (%p1706) target = $region116
      $region115: #{tpu_custom_call.1} parent=5 // pred_region
        %s1709 = ssub.s32 %s33, 2
        // Predicated region
        $region117: #{tpu_custom_call.1} parent=115 // pred_check
          %p1710 = pneg %p534
        $region118: #{tpu_custom_call.1} parent=115 // pred_check_branch
          %1712 = sbr.rel (%p1710) target = $region120
        $region119: #{tpu_custom_call.1} parent=115 // pred_region
          %s1713 = sand.u32 %s519, 1
          %s1714 = scalar_lea.sflag [#allocation4], %s1713
          %s1715 = sand.u32 %s519, 1
          %s1716 = scalar_lea.vmem [#allocation3], %s1715
          %1718 = dma.done %s1714, 16
        $region120: #{tpu_custom_call.1} parent=115 // pred_fallthru
          _
      $region116: #{tpu_custom_call.1} parent=5 // pred_fallthru
        _
    $region6: #{tpu_custom_call.1} parent=1 // loop_footer
      %s37 = sadd.s32 1, %s33
    $region7: #{tpu_custom_call.1} parent=1 // loop_footer_branch
      %32 = sbr.rel target = $region3
    $region8: #{tpu_custom_call.1} parent=1 // loop_exit
      _
    %1719 = vsyncpa [#allocation4], 1
    %s1720 = scalar_lea.sflag [#allocation4], 1
    %1721 = vsyncpa %s1720, 1

</llo_original>
